<compile_context>
chip_gen: v6e
topology: v6e:2x2x1
jax: 0.10.0
libtpu: 0.0.40
codegen_flags: <defaults>
</compile_context>

<pallas_src>
import jax
import jax.numpy as jnp
from jax.experimental import pallas as pl
from jax.experimental.pallas import tpu as pltpu


def gru_heads_kernel(emb_ref,     # VMEM (T*B, E)      f32, time-major rows r = t*B + b
                     mask_ref,    # VMEM (T*B, Hp)     f32, 1.0 where t < lens[b]
                     wih_t_ref,   # VMEM (E, 3*Hp)     f32, gate g in lanes [g*Hp, g*Hp+H)
                     whh_t_ref,   # VMEM (Hp, 3*Hp)    f32, same lane-aligned gate layout
                     bx_ref,      # VMEM (1, 3*Hp)     f32 : b_ih + [b_hh_r, b_hh_z, 0]
                     bhn_ref,     # VMEM (1, Hp)       f32 : b_hh_n
                     h0_ref,      # VMEM (B, Hp)       f32 (zero-padded past H)
                     wh_ref,      # VMEM (Hp, PCp)     f32 : fused [punct | case] weights
                     bh_ref,      # VMEM (1, PCp)      f32 : fused [punct | case] bias
                     out_ref):    # VMEM (T*B, PCp)    f32 (lane-dense, 128 wide)
    B, Hp = h0_ref.shape
    T = emb_ref.shape[0] // B

    # (1) All input-to-hidden gate projections in a single MXU dispatch; the
    #     result (T*B, 3*Hp) stays register-resident (no scratch round-trip).
    gx = (jnp.dot(emb_ref[...], wih_t_ref[...],
                  preferred_element_type=jnp.float32)
          + bx_ref[...])                                           # (T*B, 3*Hp)

    whh = whh_t_ref[...]                                           # (Hp, 3*Hp)
    bhn = jnp.broadcast_to(bhn_ref[...], (B, Hp))                  # hoisted once

    # (2) Batched recurrence, fully unrolled (T is small and static), hidden
    #     state carried as a (B, Hp) value.  Gates live in their own 128-lane
    #     tiles, so the per-step chain is MXU -> EUP -> VPU with no XLU work.
    h = h0_ref[...]
    outs = []
    for t in range(T):
        gxt = gx[t * B:(t + 1) * B, :]                             # static slice
        gh = jnp.dot(h, whh, preferred_element_type=jnp.float32)   # (B, 3*Hp)
        # PyTorch GRU gate order: [r, z, n]; b_hn applied inside r * (.)
        r = jax.nn.sigmoid(gxt[:, 0:Hp] + gh[:, 0:Hp])
        z = jax.nn.sigmoid(gxt[:, Hp:2 * Hp] + gh[:, Hp:2 * Hp])
        n = jnp.tanh(gxt[:, 2 * Hp:] + r * (gh[:, 2 * Hp:] + bhn))
        h = (1.0 - z) * n + z * h
        outs.append(h)

    # (3) packed-sequence semantics via select (no 0*NaN hazard), then one
    #     fused lane-dense matmul + store for both classification heads.
    g = jnp.concatenate(outs, axis=0)                              # (T*B, Hp)
    g = jnp.where(mask_ref[...] != 0.0, g, 0.0)
    out_ref[...] = (jnp.dot(g, wh_ref[...],
                            preferred_element_type=jnp.float32)
                    + bh_ref[...])                                 # (T*B, PCp)


def _joint_post_process_impl(token_emb, lens, params):
    """token_emb: (B, T, E) f32; lens: (B,) int32; returns (punct, case)."""
    B, T, E = token_emb.shape
    H = params["w_hh"].shape[1]
    P = params["w_punct"].shape[0]
    C = params["w_case"].shape[0]
    Hp = 128          # lane-aligned gate / hidden width
    PCp = 128         # lane-aligned fused head width (P + C <= 128)

    # Time-major flattened embeddings: row r = t*B + b.
    emb_tm = jnp.transpose(token_emb, (1, 0, 2)).reshape(T * B, E)

    # pack_padded_sequence validity mask, pre-broadcast to Hp lanes.
    mask = (jnp.arange(T, dtype=jnp.int32)[:, None]
            < lens.astype(jnp.int32)[None, :]).astype(jnp.float32)       # (T, B)
    mask_tm = jnp.broadcast_to(mask[:, :, None], (T, B, Hp)).reshape(T * B, Hp)

    # Lane-aligned gate packing: gate g occupies lanes [g*Hp, g*Hp + H).
    wih_t = params["w_ih"].T                                             # (E, 3H)
    whh_t = params["w_hh"].T                                             # (H, 3H)
    wih_pad = jnp.zeros((E, 3 * Hp), jnp.float32)
    whh_pad = jnp.zeros((Hp, 3 * Hp), jnp.float32)
    for g in range(3):
        wih_pad = wih_pad.at[:, g * Hp:g * Hp + H].set(wih_t[:, g * H:(g + 1) * H])
        whh_pad = whh_pad.at[:H, g * Hp:g * Hp + H].set(whh_t[:, g * H:(g + 1) * H])

    # Fold r/z hidden biases into the gate-input bias; keep b_hn separate
    # (PyTorch applies it inside r * (W_hn h + b_hn)).
    b_ih, b_hh = params["b_ih"], params["b_hh"]
    bx = jnp.zeros((1, 3 * Hp), jnp.float32)
    bx = bx.at[0, 0:H].set(b_ih[0:H] + b_hh[0:H])
    bx = bx.at[0, Hp:Hp + H].set(b_ih[H:2 * H] + b_hh[H:2 * H])
    bx = bx.at[0, 2 * Hp:2 * Hp + H].set(b_ih[2 * H:3 * H])
    bhn = jnp.zeros((1, Hp), jnp.float32).at[0, :H].set(b_hh[2 * H:3 * H])

    h0_pad = jnp.zeros((B, Hp), jnp.float32).at[:, :H].set(params["h0"])

    # Fused [punct | case] head, zero-padded to 128 output lanes.
    wh_pad = jnp.zeros((Hp, PCp), jnp.float32)
    wh_pad = wh_pad.at[:H, :P].set(params["w_punct"].T)
    wh_pad = wh_pad.at[:H, P:P + C].set(params["w_case"].T)
    bh_pad = jnp.zeros((1, PCp), jnp.float32)
    bh_pad = bh_pad.at[0, :P].set(params["b_punct"])
    bh_pad = bh_pad.at[0, P:P + C].set(params["b_case"])

    vmem_spec = pl.BlockSpec(memory_space=pltpu.MemorySpace.VMEM)

    out_tm = pl.pallas_call(
        gru_heads_kernel,
        out_shape=jax.ShapeDtypeStruct((T * B, PCp), jnp.float32),
        # grid-less: single invocation, whole-batch recurrence in one pass
        in_specs=[vmem_spec] * 9,
        out_specs=vmem_spec,
        cost_estimate=pl.CostEstimate(flops=2_500_000,
                                      transcendentals=6_200,
                                      bytes_accessed=350_000),
    )(emb_tm, mask_tm, wih_pad, whh_pad, bx, bhn, h0_pad, wh_pad, bh_pad)

    out = out_tm.reshape(T, B, PCp).transpose(1, 0, 2)     # (B, T, 128)
    return out[..., :P], out[..., P:P + C]


joint_post_process = jax.jit(_joint_post_process_impl)


def ref_forward(emb, lens, params):
    """Pure-JAX reference of the masked GRU + heads."""
    B, T, E = emb.shape
    H = params["w_hh"].shape[1]

    def run_one(x, h0, L):
        def step(h, xt_t):
            xt, t = xt_t
            gx = params["w_ih"] @ xt + params["b_ih"]
            gh = params["w_hh"] @ h + params["b_hh"]
            r = jax.nn.sigmoid(gx[:H] + gh[:H])
            z = jax.nn.sigmoid(gx[H:2 * H] + gh[H:2 * H])
            n = jnp.tanh(gx[2 * H:] + r * gh[2 * H:])
            h_next = (1.0 - z) * n + z * h
            valid = t < L
            out = jnp.where(valid, h_next, 0.0)
            return jnp.where(valid, h_next, h), out

        _, outs = jax.lax.scan(step, h0, (x, jnp.arange(T)))
        return outs

    gru = jax.vmap(run_one)(emb, params["h0"], lens)
    punct = gru @ params["w_punct"].T + params["b_punct"]
    case = gru @ params["w_case"].T + params["b_case"]
    return punct, case


if __name__ == "__main__":
    B, T, E, H, P, C, V = 2, 8, 32, 32, 8, 4, 100

    key = jax.random.PRNGKey(0)
    keys = jax.random.split(key, 12)

    # TODO(synk): encoder.extract_features is an external module with no
    # definition here; substituted by a deterministic embedding-table lookup.
    emb_table = jax.random.normal(keys[0], (V, E), jnp.float32) * 0.1
    tokens = jax.random.randint(keys[1], (B, T), 0, V)
    token_emb = emb_table[tokens]                       # (B, T, E)
    lens = jnp.array([8, 6], jnp.int32)

    k = 1.0 / jnp.sqrt(jnp.float32(H))
    xavier_bound = jnp.sqrt(2.0) * jnp.sqrt(6.0 / (B + H))  # relu-gain xavier for h0
    params = dict(
        w_ih=jax.random.uniform(keys[2], (3 * H, E), jnp.float32, -k, k),
        w_hh=jax.random.uniform(keys[3], (3 * H, H), jnp.float32, -k, k),
        b_ih=jax.random.uniform(keys[4], (3 * H,), jnp.float32, -k, k),
        b_hh=jax.random.uniform(keys[5], (3 * H,), jnp.float32, -k, k),
        h0=jax.random.uniform(keys[6], (B, H), jnp.float32,
                              -xavier_bound, xavier_bound),
        w_punct=jax.random.uniform(keys[7], (P, H), jnp.float32, -k, k),
        b_punct=jax.random.uniform(keys[8], (P,), jnp.float32, -k, k),
        w_case=jax.random.uniform(keys[9], (C, H), jnp.float32, -k, k),
        b_case=jax.random.uniform(keys[10], (C,), jnp.float32, -k, k),
    )

    punct, case = joint_post_process(token_emb, lens, params)
    jax.block_until_ready((punct, case))

    punct_ref, case_ref = ref_forward(token_emb, lens, params)
    assert jnp.allclose(punct, punct_ref, atol=1e-4, rtol=1e-4)
    assert jnp.allclose(case, case_ref, atol=1e-4, rtol=1e-4)
    assert punct.shape == (B, T, P) and case.shape == (B, T, C)

    print("KERNEL_OK")
</pallas_src>

<mosaic_0001>
module attributes {stable_mosaic.version = 11 : i64} {
  func.func @gru_heads_kernel(%arg0: memref<16x32xf32, #tpu.memory_space<vmem>>, %arg1: memref<16x128xf32, #tpu.memory_space<vmem>>, %arg2: memref<32x384xf32, #tpu.memory_space<vmem>>, %arg3: memref<128x384xf32, #tpu.memory_space<vmem>>, %arg4: memref<1x384xf32, #tpu.memory_space<vmem>>, %arg5: memref<1x128xf32, #tpu.memory_space<vmem>>, %arg6: memref<2x128xf32, #tpu.memory_space<vmem>>, %arg7: memref<128x128xf32, #tpu.memory_space<vmem>>, %arg8: memref<1x128xf32, #tpu.memory_space<vmem>>, %arg9: memref<16x128xf32, #tpu.memory_space<vmem>>) attributes {dimension_semantics = [], scalar_prefetch = 0 : i64, scratch_operands = 0 : i64, tpu.core_type = #tpu.core_type<tc>} {
    %c0 = arith.constant 0 : index
    %c0_0 = arith.constant 0 : index
    %0 = vector.load %arg0[%c0, %c0_0] : memref<16x32xf32, #tpu.memory_space<vmem>>, vector<16x32xf32>
    %c0_1 = arith.constant 0 : index
    %c0_2 = arith.constant 0 : index
    %1 = vector.load %arg2[%c0_1, %c0_2] : memref<32x384xf32, #tpu.memory_space<vmem>>, vector<32x384xf32>
    %cst = arith.constant dense<0.000000e+00> : vector<16x384xf32>
    %2 = tpu.matmul %0, %1, %cst {dimension_numbers = #tpu.dot_dimension_numbers<[1], [0], [0], [1], [0, 0, 1, 1], [], []>} : vector<16x32xf32>, vector<32x384xf32>, vector<16x384xf32> -> vector<16x384xf32>
    %c0_3 = arith.constant 0 : index
    %c0_4 = arith.constant 0 : index
    %3 = vector.load %arg4[%c0_3, %c0_4] : memref<1x384xf32, #tpu.memory_space<vmem>>, vector<1x384xf32>
    %4 = vector.broadcast %3 : vector<1x384xf32> to vector<16x384xf32>
    %5 = arith.addf %2, %4 : vector<16x384xf32>
    %c0_5 = arith.constant 0 : index
    %c0_6 = arith.constant 0 : index
    %6 = vector.load %arg3[%c0_5, %c0_6] : memref<128x384xf32, #tpu.memory_space<vmem>>, vector<128x384xf32>
    %c0_7 = arith.constant 0 : index
    %c0_8 = arith.constant 0 : index
    %7 = vector.load %arg5[%c0_7, %c0_8] : memref<1x128xf32, #tpu.memory_space<vmem>>, vector<1x128xf32>
    %8 = vector.shape_cast %7 : vector<1x128xf32> to vector<1x128xf32>
    %9 = vector.broadcast %8 : vector<1x128xf32> to vector<2x128xf32>
    %c0_9 = arith.constant 0 : index
    %c0_10 = arith.constant 0 : index
    %10 = vector.load %arg6[%c0_9, %c0_10] : memref<2x128xf32, #tpu.memory_space<vmem>>, vector<2x128xf32>
    %11 = vector.extract_strided_slice %5 {offsets = [0, 0], sizes = [2, 384], strides = [1, 1]} : vector<16x384xf32> to vector<2x384xf32>
    %cst_11 = arith.constant dense<0.000000e+00> : vector<2x384xf32>
    %12 = tpu.matmul %10, %6, %cst_11 {dimension_numbers = #tpu.dot_dimension_numbers<[1], [0], [0], [1], [0, 0, 1, 1], [], []>} : vector<2x128xf32>, vector<128x384xf32>, vector<2x384xf32> -> vector<2x384xf32>
    %13 = vector.extract_strided_slice %11 {offsets = [0, 0], sizes = [2, 128], strides = [1, 1]} : vector<2x384xf32> to vector<2x128xf32>
    %14 = vector.extract_strided_slice %12 {offsets = [0, 0], sizes = [2, 128], strides = [1, 1]} : vector<2x384xf32> to vector<2x128xf32>
    %15 = arith.addf %13, %14 : vector<2x128xf32>
    %16 = arith.negf %15 : vector<2x128xf32>
    %17 = math.exp %16 : vector<2x128xf32>
    %cst_12 = arith.constant 1.000000e+00 : f32
    %18 = vector.broadcast %cst_12 : f32 to vector<2x128xf32>
    %19 = arith.addf %18, %17 : vector<2x128xf32>
    %20 = arith.divf %18, %19 : vector<2x128xf32>
    %21 = vector.extract_strided_slice %11 {offsets = [0, 128], sizes = [2, 128], strides = [1, 1]} : vector<2x384xf32> to vector<2x128xf32>
    %22 = vector.extract_strided_slice %12 {offsets = [0, 128], sizes = [2, 128], strides = [1, 1]} : vector<2x384xf32> to vector<2x128xf32>
    %23 = arith.addf %21, %22 : vector<2x128xf32>
    %24 = arith.negf %23 : vector<2x128xf32>
    %25 = math.exp %24 : vector<2x128xf32>
    %cst_13 = arith.constant 1.000000e+00 : f32
    %26 = vector.broadcast %cst_13 : f32 to vector<2x128xf32>
    %27 = arith.addf %26, %25 : vector<2x128xf32>
    %28 = arith.divf %26, %27 : vector<2x128xf32>
    %29 = vector.extract_strided_slice %11 {offsets = [0, 256], sizes = [2, 128], strides = [1, 1]} : vector<2x384xf32> to vector<2x128xf32>
    %30 = vector.extract_strided_slice %12 {offsets = [0, 256], sizes = [2, 128], strides = [1, 1]} : vector<2x384xf32> to vector<2x128xf32>
    %31 = arith.addf %30, %9 : vector<2x128xf32>
    %32 = arith.mulf %20, %31 : vector<2x128xf32>
    %33 = arith.addf %29, %32 : vector<2x128xf32>
    %34 = math.tanh %33 : vector<2x128xf32>
    %cst_14 = arith.constant 1.000000e+00 : f32
    %35 = vector.broadcast %cst_14 : f32 to vector<2x128xf32>
    %36 = arith.subf %35, %28 : vector<2x128xf32>
    %37 = arith.mulf %36, %34 : vector<2x128xf32>
    %38 = arith.mulf %28, %10 : vector<2x128xf32>
    %39 = arith.addf %37, %38 : vector<2x128xf32>
    %40 = vector.extract_strided_slice %5 {offsets = [2, 0], sizes = [2, 384], strides = [1, 1]} : vector<16x384xf32> to vector<2x384xf32>
    %cst_15 = arith.constant dense<0.000000e+00> : vector<2x384xf32>
    %41 = tpu.matmul %39, %6, %cst_15 {dimension_numbers = #tpu.dot_dimension_numbers<[1], [0], [0], [1], [0, 0, 1, 1], [], []>} : vector<2x128xf32>, vector<128x384xf32>, vector<2x384xf32> -> vector<2x384xf32>
    %42 = vector.extract_strided_slice %40 {offsets = [0, 0], sizes = [2, 128], strides = [1, 1]} : vector<2x384xf32> to vector<2x128xf32>
    %43 = vector.extract_strided_slice %41 {offsets = [0, 0], sizes = [2, 128], strides = [1, 1]} : vector<2x384xf32> to vector<2x128xf32>
    %44 = arith.addf %42, %43 : vector<2x128xf32>
    %45 = arith.negf %44 : vector<2x128xf32>
    %46 = math.exp %45 : vector<2x128xf32>
    %cst_16 = arith.constant 1.000000e+00 : f32
    %47 = vector.broadcast %cst_16 : f32 to vector<2x128xf32>
    %48 = arith.addf %47, %46 : vector<2x128xf32>
    %49 = arith.divf %47, %48 : vector<2x128xf32>
    %50 = vector.extract_strided_slice %40 {offsets = [0, 128], sizes = [2, 128], strides = [1, 1]} : vector<2x384xf32> to vector<2x128xf32>
    %51 = vector.extract_strided_slice %41 {offsets = [0, 128], sizes = [2, 128], strides = [1, 1]} : vector<2x384xf32> to vector<2x128xf32>
    %52 = arith.addf %50, %51 : vector<2x128xf32>
    %53 = arith.negf %52 : vector<2x128xf32>
    %54 = math.exp %53 : vector<2x128xf32>
    %cst_17 = arith.constant 1.000000e+00 : f32
    %55 = vector.broadcast %cst_17 : f32 to vector<2x128xf32>
    %56 = arith.addf %55, %54 : vector<2x128xf32>
    %57 = arith.divf %55, %56 : vector<2x128xf32>
    %58 = vector.extract_strided_slice %40 {offsets = [0, 256], sizes = [2, 128], strides = [1, 1]} : vector<2x384xf32> to vector<2x128xf32>
    %59 = vector.extract_strided_slice %41 {offsets = [0, 256], sizes = [2, 128], strides = [1, 1]} : vector<2x384xf32> to vector<2x128xf32>
    %60 = arith.addf %59, %9 : vector<2x128xf32>
    %61 = arith.mulf %49, %60 : vector<2x128xf32>
    %62 = arith.addf %58, %61 : vector<2x128xf32>
    %63 = math.tanh %62 : vector<2x128xf32>
    %cst_18 = arith.constant 1.000000e+00 : f32
    %64 = vector.broadcast %cst_18 : f32 to vector<2x128xf32>
    %65 = arith.subf %64, %57 : vector<2x128xf32>
    %66 = arith.mulf %65, %63 : vector<2x128xf32>
    %67 = arith.mulf %57, %39 : vector<2x128xf32>
    %68 = arith.addf %66, %67 : vector<2x128xf32>
    %69 = vector.extract_strided_slice %5 {offsets = [4, 0], sizes = [2, 384], strides = [1, 1]} : vector<16x384xf32> to vector<2x384xf32>
    %cst_19 = arith.constant dense<0.000000e+00> : vector<2x384xf32>
    %70 = tpu.matmul %68, %6, %cst_19 {dimension_numbers = #tpu.dot_dimension_numbers<[1], [0], [0], [1], [0, 0, 1, 1], [], []>} : vector<2x128xf32>, vector<128x384xf32>, vector<2x384xf32> -> vector<2x384xf32>
    %71 = vector.extract_strided_slice %69 {offsets = [0, 0], sizes = [2, 128], strides = [1, 1]} : vector<2x384xf32> to vector<2x128xf32>
    %72 = vector.extract_strided_slice %70 {offsets = [0, 0], sizes = [2, 128], strides = [1, 1]} : vector<2x384xf32> to vector<2x128xf32>
    %73 = arith.addf %71, %72 : vector<2x128xf32>
    %74 = arith.negf %73 : vector<2x128xf32>
    %75 = math.exp %74 : vector<2x128xf32>
    %cst_20 = arith.constant 1.000000e+00 : f32
    %76 = vector.broadcast %cst_20 : f32 to vector<2x128xf32>
    %77 = arith.addf %76, %75 : vector<2x128xf32>
    %78 = arith.divf %76, %77 : vector<2x128xf32>
    %79 = vector.extract_strided_slice %69 {offsets = [0, 128], sizes = [2, 128], strides = [1, 1]} : vector<2x384xf32> to vector<2x128xf32>
    %80 = vector.extract_strided_slice %70 {offsets = [0, 128], sizes = [2, 128], strides = [1, 1]} : vector<2x384xf32> to vector<2x128xf32>
    %81 = arith.addf %79, %80 : vector<2x128xf32>
    %82 = arith.negf %81 : vector<2x128xf32>
    %83 = math.exp %82 : vector<2x128xf32>
    %cst_21 = arith.constant 1.000000e+00 : f32
    %84 = vector.broadcast %cst_21 : f32 to vector<2x128xf32>
    %85 = arith.addf %84, %83 : vector<2x128xf32>
    %86 = arith.divf %84, %85 : vector<2x128xf32>
    %87 = vector.extract_strided_slice %69 {offsets = [0, 256], sizes = [2, 128], strides = [1, 1]} : vector<2x384xf32> to vector<2x128xf32>
    %88 = vector.extract_strided_slice %70 {offsets = [0, 256], sizes = [2, 128], strides = [1, 1]} : vector<2x384xf32> to vector<2x128xf32>
    %89 = arith.addf %88, %9 : vector<2x128xf32>
    %90 = arith.mulf %78, %89 : vector<2x128xf32>
    %91 = arith.addf %87, %90 : vector<2x128xf32>
    %92 = math.tanh %91 : vector<2x128xf32>
    %cst_22 = arith.constant 1.000000e+00 : f32
    %93 = vector.broadcast %cst_22 : f32 to vector<2x128xf32>
    %94 = arith.subf %93, %86 : vector<2x128xf32>
    %95 = arith.mulf %94, %92 : vector<2x128xf32>
    %96 = arith.mulf %86, %68 : vector<2x128xf32>
    %97 = arith.addf %95, %96 : vector<2x128xf32>
    %98 = vector.extract_strided_slice %5 {offsets = [6, 0], sizes = [2, 384], strides = [1, 1]} : vector<16x384xf32> to vector<2x384xf32>
    %cst_23 = arith.constant dense<0.000000e+00> : vector<2x384xf32>
    %99 = tpu.matmul %97, %6, %cst_23 {dimension_numbers = #tpu.dot_dimension_numbers<[1], [0], [0], [1], [0, 0, 1, 1], [], []>} : vector<2x128xf32>, vector<128x384xf32>, vector<2x384xf32> -> vector<2x384xf32>
    %100 = vector.extract_strided_slice %98 {offsets = [0, 0], sizes = [2, 128], strides = [1, 1]} : vector<2x384xf32> to vector<2x128xf32>
    %101 = vector.extract_strided_slice %99 {offsets = [0, 0], sizes = [2, 128], strides = [1, 1]} : vector<2x384xf32> to vector<2x128xf32>
    %102 = arith.addf %100, %101 : vector<2x128xf32>
    %103 = arith.negf %102 : vector<2x128xf32>
    %104 = math.exp %103 : vector<2x128xf32>
    %cst_24 = arith.constant 1.000000e+00 : f32
    %105 = vector.broadcast %cst_24 : f32 to vector<2x128xf32>
    %106 = arith.addf %105, %104 : vector<2x128xf32>
    %107 = arith.divf %105, %106 : vector<2x128xf32>
    %108 = vector.extract_strided_slice %98 {offsets = [0, 128], sizes = [2, 128], strides = [1, 1]} : vector<2x384xf32> to vector<2x128xf32>
    %109 = vector.extract_strided_slice %99 {offsets = [0, 128], sizes = [2, 128], strides = [1, 1]} : vector<2x384xf32> to vector<2x128xf32>
    %110 = arith.addf %108, %109 : vector<2x128xf32>
    %111 = arith.negf %110 : vector<2x128xf32>
    %112 = math.exp %111 : vector<2x128xf32>
    %cst_25 = arith.constant 1.000000e+00 : f32
    %113 = vector.broadcast %cst_25 : f32 to vector<2x128xf32>
    %114 = arith.addf %113, %112 : vector<2x128xf32>
    %115 = arith.divf %113, %114 : vector<2x128xf32>
    %116 = vector.extract_strided_slice %98 {offsets = [0, 256], sizes = [2, 128], strides = [1, 1]} : vector<2x384xf32> to vector<2x128xf32>
    %117 = vector.extract_strided_slice %99 {offsets = [0, 256], sizes = [2, 128], strides = [1, 1]} : vector<2x384xf32> to vector<2x128xf32>
    %118 = arith.addf %117, %9 : vector<2x128xf32>
    %119 = arith.mulf %107, %118 : vector<2x128xf32>
    %120 = arith.addf %116, %119 : vector<2x128xf32>
    %121 = math.tanh %120 : vector<2x128xf32>
    %cst_26 = arith.constant 1.000000e+00 : f32
    %122 = vector.broadcast %cst_26 : f32 to vector<2x128xf32>
    %123 = arith.subf %122, %115 : vector<2x128xf32>
    %124 = arith.mulf %123, %121 : vector<2x128xf32>
    %125 = arith.mulf %115, %97 : vector<2x128xf32>
    %126 = arith.addf %124, %125 : vector<2x128xf32>
    %127 = vector.extract_strided_slice %5 {offsets = [8, 0], sizes = [2, 384], strides = [1, 1]} : vector<16x384xf32> to vector<2x384xf32>
    %cst_27 = arith.constant dense<0.000000e+00> : vector<2x384xf32>
    %128 = tpu.matmul %126, %6, %cst_27 {dimension_numbers = #tpu.dot_dimension_numbers<[1], [0], [0], [1], [0, 0, 1, 1], [], []>} : vector<2x128xf32>, vector<128x384xf32>, vector<2x384xf32> -> vector<2x384xf32>
    %129 = vector.extract_strided_slice %127 {offsets = [0, 0], sizes = [2, 128], strides = [1, 1]} : vector<2x384xf32> to vector<2x128xf32>
    %130 = vector.extract_strided_slice %128 {offsets = [0, 0], sizes = [2, 128], strides = [1, 1]} : vector<2x384xf32> to vector<2x128xf32>
    %131 = arith.addf %129, %130 : vector<2x128xf32>
    %132 = arith.negf %131 : vector<2x128xf32>
    %133 = math.exp %132 : vector<2x128xf32>
    %cst_28 = arith.constant 1.000000e+00 : f32
    %134 = vector.broadcast %cst_28 : f32 to vector<2x128xf32>
    %135 = arith.addf %134, %133 : vector<2x128xf32>
    %136 = arith.divf %134, %135 : vector<2x128xf32>
    %137 = vector.extract_strided_slice %127 {offsets = [0, 128], sizes = [2, 128], strides = [1, 1]} : vector<2x384xf32> to vector<2x128xf32>
    %138 = vector.extract_strided_slice %128 {offsets = [0, 128], sizes = [2, 128], strides = [1, 1]} : vector<2x384xf32> to vector<2x128xf32>
    %139 = arith.addf %137, %138 : vector<2x128xf32>
    %140 = arith.negf %139 : vector<2x128xf32>
    %141 = math.exp %140 : vector<2x128xf32>
    %cst_29 = arith.constant 1.000000e+00 : f32
    %142 = vector.broadcast %cst_29 : f32 to vector<2x128xf32>
    %143 = arith.addf %142, %141 : vector<2x128xf32>
    %144 = arith.divf %142, %143 : vector<2x128xf32>
    %145 = vector.extract_strided_slice %127 {offsets = [0, 256], sizes = [2, 128], strides = [1, 1]} : vector<2x384xf32> to vector<2x128xf32>
    %146 = vector.extract_strided_slice %128 {offsets = [0, 256], sizes = [2, 128], strides = [1, 1]} : vector<2x384xf32> to vector<2x128xf32>
    %147 = arith.addf %146, %9 : vector<2x128xf32>
    %148 = arith.mulf %136, %147 : vector<2x128xf32>
    %149 = arith.addf %145, %148 : vector<2x128xf32>
    %150 = math.tanh %149 : vector<2x128xf32>
    %cst_30 = arith.constant 1.000000e+00 : f32
    %151 = vector.broadcast %cst_30 : f32 to vector<2x128xf32>
    %152 = arith.subf %151, %144 : vector<2x128xf32>
    %153 = arith.mulf %152, %150 : vector<2x128xf32>
    %154 = arith.mulf %144, %126 : vector<2x128xf32>
    %155 = arith.addf %153, %154 : vector<2x128xf32>
    %156 = vector.extract_strided_slice %5 {offsets = [10, 0], sizes = [2, 384], strides = [1, 1]} : vector<16x384xf32> to vector<2x384xf32>
    %cst_31 = arith.constant dense<0.000000e+00> : vector<2x384xf32>
    %157 = tpu.matmul %155, %6, %cst_31 {dimension_numbers = #tpu.dot_dimension_numbers<[1], [0], [0], [1], [0, 0, 1, 1], [], []>} : vector<2x128xf32>, vector<128x384xf32>, vector<2x384xf32> -> vector<2x384xf32>
    %158 = vector.extract_strided_slice %156 {offsets = [0, 0], sizes = [2, 128], strides = [1, 1]} : vector<2x384xf32> to vector<2x128xf32>
    %159 = vector.extract_strided_slice %157 {offsets = [0, 0], sizes = [2, 128], strides = [1, 1]} : vector<2x384xf32> to vector<2x128xf32>
    %160 = arith.addf %158, %159 : vector<2x128xf32>
    %161 = arith.negf %160 : vector<2x128xf32>
    %162 = math.exp %161 : vector<2x128xf32>
    %cst_32 = arith.constant 1.000000e+00 : f32
    %163 = vector.broadcast %cst_32 : f32 to vector<2x128xf32>
    %164 = arith.addf %163, %162 : vector<2x128xf32>
    %165 = arith.divf %163, %164 : vector<2x128xf32>
    %166 = vector.extract_strided_slice %156 {offsets = [0, 128], sizes = [2, 128], strides = [1, 1]} : vector<2x384xf32> to vector<2x128xf32>
    %167 = vector.extract_strided_slice %157 {offsets = [0, 128], sizes = [2, 128], strides = [1, 1]} : vector<2x384xf32> to vector<2x128xf32>
    %168 = arith.addf %166, %167 : vector<2x128xf32>
    %169 = arith.negf %168 : vector<2x128xf32>
    %170 = math.exp %169 : vector<2x128xf32>
    %cst_33 = arith.constant 1.000000e+00 : f32
    %171 = vector.broadcast %cst_33 : f32 to vector<2x128xf32>
    %172 = arith.addf %171, %170 : vector<2x128xf32>
    %173 = arith.divf %171, %172 : vector<2x128xf32>
    %174 = vector.extract_strided_slice %156 {offsets = [0, 256], sizes = [2, 128], strides = [1, 1]} : vector<2x384xf32> to vector<2x128xf32>
    %175 = vector.extract_strided_slice %157 {offsets = [0, 256], sizes = [2, 128], strides = [1, 1]} : vector<2x384xf32> to vector<2x128xf32>
    %176 = arith.addf %175, %9 : vector<2x128xf32>
    %177 = arith.mulf %165, %176 : vector<2x128xf32>
    %178 = arith.addf %174, %177 : vector<2x128xf32>
    %179 = math.tanh %178 : vector<2x128xf32>
    %cst_34 = arith.constant 1.000000e+00 : f32
    %180 = vector.broadcast %cst_34 : f32 to vector<2x128xf32>
    %181 = arith.subf %180, %173 : vector<2x128xf32>
    %182 = arith.mulf %181, %179 : vector<2x128xf32>
    %183 = arith.mulf %173, %155 : vector<2x128xf32>
    %184 = arith.addf %182, %183 : vector<2x128xf32>
    %185 = vector.extract_strided_slice %5 {offsets = [12, 0], sizes = [2, 384], strides = [1, 1]} : vector<16x384xf32> to vector<2x384xf32>
    %cst_35 = arith.constant dense<0.000000e+00> : vector<2x384xf32>
    %186 = tpu.matmul %184, %6, %cst_35 {dimension_numbers = #tpu.dot_dimension_numbers<[1], [0], [0], [1], [0, 0, 1, 1], [], []>} : vector<2x128xf32>, vector<128x384xf32>, vector<2x384xf32> -> vector<2x384xf32>
    %187 = vector.extract_strided_slice %185 {offsets = [0, 0], sizes = [2, 128], strides = [1, 1]} : vector<2x384xf32> to vector<2x128xf32>
    %188 = vector.extract_strided_slice %186 {offsets = [0, 0], sizes = [2, 128], strides = [1, 1]} : vector<2x384xf32> to vector<2x128xf32>
    %189 = arith.addf %187, %188 : vector<2x128xf32>
    %190 = arith.negf %189 : vector<2x128xf32>
    %191 = math.exp %190 : vector<2x128xf32>
    %cst_36 = arith.constant 1.000000e+00 : f32
    %192 = vector.broadcast %cst_36 : f32 to vector<2x128xf32>
    %193 = arith.addf %192, %191 : vector<2x128xf32>
    %194 = arith.divf %192, %193 : vector<2x128xf32>
    %195 = vector.extract_strided_slice %185 {offsets = [0, 128], sizes = [2, 128], strides = [1, 1]} : vector<2x384xf32> to vector<2x128xf32>
    %196 = vector.extract_strided_slice %186 {offsets = [0, 128], sizes = [2, 128], strides = [1, 1]} : vector<2x384xf32> to vector<2x128xf32>
    %197 = arith.addf %195, %196 : vector<2x128xf32>
    %198 = arith.negf %197 : vector<2x128xf32>
    %199 = math.exp %198 : vector<2x128xf32>
    %cst_37 = arith.constant 1.000000e+00 : f32
    %200 = vector.broadcast %cst_37 : f32 to vector<2x128xf32>
    %201 = arith.addf %200, %199 : vector<2x128xf32>
    %202 = arith.divf %200, %201 : vector<2x128xf32>
    %203 = vector.extract_strided_slice %185 {offsets = [0, 256], sizes = [2, 128], strides = [1, 1]} : vector<2x384xf32> to vector<2x128xf32>
    %204 = vector.extract_strided_slice %186 {offsets = [0, 256], sizes = [2, 128], strides = [1, 1]} : vector<2x384xf32> to vector<2x128xf32>
    %205 = arith.addf %204, %9 : vector<2x128xf32>
    %206 = arith.mulf %194, %205 : vector<2x128xf32>
    %207 = arith.addf %203, %206 : vector<2x128xf32>
    %208 = math.tanh %207 : vector<2x128xf32>
    %cst_38 = arith.constant 1.000000e+00 : f32
    %209 = vector.broadcast %cst_38 : f32 to vector<2x128xf32>
    %210 = arith.subf %209, %202 : vector<2x128xf32>
    %211 = arith.mulf %210, %208 : vector<2x128xf32>
    %212 = arith.mulf %202, %184 : vector<2x128xf32>
    %213 = arith.addf %211, %212 : vector<2x128xf32>
    %214 = vector.extract_strided_slice %5 {offsets = [14, 0], sizes = [2, 384], strides = [1, 1]} : vector<16x384xf32> to vector<2x384xf32>
    %cst_39 = arith.constant dense<0.000000e+00> : vector<2x384xf32>
    %215 = tpu.matmul %213, %6, %cst_39 {dimension_numbers = #tpu.dot_dimension_numbers<[1], [0], [0], [1], [0, 0, 1, 1], [], []>} : vector<2x128xf32>, vector<128x384xf32>, vector<2x384xf32> -> vector<2x384xf32>
    %216 = vector.extract_strided_slice %214 {offsets = [0, 0], sizes = [2, 128], strides = [1, 1]} : vector<2x384xf32> to vector<2x128xf32>
    %217 = vector.extract_strided_slice %215 {offsets = [0, 0], sizes = [2, 128], strides = [1, 1]} : vector<2x384xf32> to vector<2x128xf32>
    %218 = arith.addf %216, %217 : vector<2x128xf32>
    %219 = arith.negf %218 : vector<2x128xf32>
    %220 = math.exp %219 : vector<2x128xf32>
    %cst_40 = arith.constant 1.000000e+00 : f32
    %221 = vector.broadcast %cst_40 : f32 to vector<2x128xf32>
    %222 = arith.addf %221, %220 : vector<2x128xf32>
    %223 = arith.divf %221, %222 : vector<2x128xf32>
    %224 = vector.extract_strided_slice %214 {offsets = [0, 128], sizes = [2, 128], strides = [1, 1]} : vector<2x384xf32> to vector<2x128xf32>
    %225 = vector.extract_strided_slice %215 {offsets = [0, 128], sizes = [2, 128], strides = [1, 1]} : vector<2x384xf32> to vector<2x128xf32>
    %226 = arith.addf %224, %225 : vector<2x128xf32>
    %227 = arith.negf %226 : vector<2x128xf32>
    %228 = math.exp %227 : vector<2x128xf32>
    %cst_41 = arith.constant 1.000000e+00 : f32
    %229 = vector.broadcast %cst_41 : f32 to vector<2x128xf32>
    %230 = arith.addf %229, %228 : vector<2x128xf32>
    %231 = arith.divf %229, %230 : vector<2x128xf32>
    %232 = vector.extract_strided_slice %214 {offsets = [0, 256], sizes = [2, 128], strides = [1, 1]} : vector<2x384xf32> to vector<2x128xf32>
    %233 = vector.extract_strided_slice %215 {offsets = [0, 256], sizes = [2, 128], strides = [1, 1]} : vector<2x384xf32> to vector<2x128xf32>
    %234 = arith.addf %233, %9 : vector<2x128xf32>
    %235 = arith.mulf %223, %234 : vector<2x128xf32>
    %236 = arith.addf %232, %235 : vector<2x128xf32>
    %237 = math.tanh %236 : vector<2x128xf32>
    %cst_42 = arith.constant 1.000000e+00 : f32
    %238 = vector.broadcast %cst_42 : f32 to vector<2x128xf32>
    %239 = arith.subf %238, %231 : vector<2x128xf32>
    %240 = arith.mulf %239, %237 : vector<2x128xf32>
    %241 = arith.mulf %231, %213 : vector<2x128xf32>
    %242 = arith.addf %240, %241 : vector<2x128xf32>
    %243 = tpu.concatenate %39, %68, %97, %126, %155, %184, %213, %242 in 0 : vector<2x128xf32>, vector<2x128xf32>, vector<2x128xf32>, vector<2x128xf32>, vector<2x128xf32>, vector<2x128xf32>, vector<2x128xf32>, vector<2x128xf32> -> vector<16x128xf32>
    %c0_43 = arith.constant 0 : index
    %c0_44 = arith.constant 0 : index
    %244 = vector.load %arg1[%c0_43, %c0_44] : memref<16x128xf32, #tpu.memory_space<vmem>>, vector<16x128xf32>
    %cst_45 = arith.constant 0.000000e+00 : f32
    %245 = vector.broadcast %cst_45 : f32 to vector<16x128xf32>
    %246 = arith.cmpf one, %244, %245 : vector<16x128xf32>
    %cst_46 = arith.constant 0.000000e+00 : f32
    %247 = vector.broadcast %cst_46 : f32 to vector<16x128xf32>
    %248 = arith.select %246, %243, %247 : vector<16x128xi1>, vector<16x128xf32>
    %c0_47 = arith.constant 0 : index
    %c0_48 = arith.constant 0 : index
    %249 = vector.load %arg7[%c0_47, %c0_48] : memref<128x128xf32, #tpu.memory_space<vmem>>, vector<128x128xf32>
    %cst_49 = arith.constant dense<0.000000e+00> : vector<16x128xf32>
    %250 = tpu.matmul %248, %249, %cst_49 {dimension_numbers = #tpu.dot_dimension_numbers<[1], [0], [0], [1], [0, 0, 1, 1], [], []>} : vector<16x128xf32>, vector<128x128xf32>, vector<16x128xf32> -> vector<16x128xf32>
    %c0_50 = arith.constant 0 : index
    %c0_51 = arith.constant 0 : index
    %251 = vector.load %arg8[%c0_50, %c0_51] : memref<1x128xf32, #tpu.memory_space<vmem>>, vector<1x128xf32>
    %252 = vector.broadcast %251 : vector<1x128xf32> to vector<16x128xf32>
    %253 = arith.addf %250, %252 : vector<16x128xf32>
    %c0_52 = arith.constant 0 : index
    %c0_53 = arith.constant 0 : index
    %254 = vector.load %arg9[%c0_52, %c0_53] : memref<16x128xf32, #tpu.memory_space<vmem>>, vector<16x128xf32>
    tpu.vector_store %arg9[%c0_52, %c0_53], %253 {strides = array<i32>} : memref<16x128xf32, #tpu.memory_space<vmem>>, vector<16x128xf32>,
    return
  }
}

</mosaic_0001>

<llo_original>
// kernel: _joint_post_process_impl.1
$region0: #{_joint_post_process_impl.1}
  #allocation0 [shape = 'u32[]', space=smem, size = 0x4, offset = 0x4, fixed_abs, tag = 'smem constant byte address 0x4 - core index']
  #allocation1 [shape = 'u32[144,128]{1,0:T(1,128)}', space=vmem, size = 0x12000, scoped, tag = 'internal scratch']
  %s0 = inlined_call_operand.vmem [shape: f32[16,32], index: 0, kind: input, shape index: {}]
  %s1 = inlined_call_operand.vmem [shape: f32[16,128], index: 1, kind: input, shape index: {}]
  %s2 = inlined_call_operand.vmem [shape: f32[32,384], index: 2, kind: input, shape index: {}]
  %s3 = inlined_call_operand.vmem [shape: f32[128,384], index: 3, kind: input, shape index: {}]
  %s4 = inlined_call_operand.vmem [shape: f32[1,384], index: 4, kind: input, shape index: {}]
  %s5 = inlined_call_operand.vmem [shape: f32[1,128], index: 5, kind: input, shape index: {}]
  %s6 = inlined_call_operand.vmem [shape: f32[2,128], index: 6, kind: input, shape index: {}]
  %s7 = inlined_call_operand.vmem [shape: f32[128,128], index: 7, kind: input, shape index: {}]
  %s8 = inlined_call_operand.vmem [shape: f32[1,128], index: 8, kind: input, shape index: {}]
  %s9 = inlined_call_operand.vmem [shape: f32[16,128], index: 9, kind: output, shape index: {}]
  %s10 = sld [smem:[#allocation0]]
  $region46: #{_joint_post_process_impl.1} parent=0
    _
  %s12 = ssub.s32 1, %s10
  %s13 = scalar_select 0, %s12, %s10
  // Predicated region
  $region2: #{_joint_post_process_impl.1} parent=0 // pred_check
    _
  $region3: #{_joint_post_process_impl.1} parent=0 // pred_check_branch
    %15 = sbr.rel (0) target = $region5
  $region4: #{_joint_post_process_impl.1} parent=0 // pred_region
    _
  $region5: #{_joint_post_process_impl.1} parent=0 // pred_fallthru
    _
  // Predicated region
  $region6: #{_joint_post_process_impl.1} parent=0 // pred_check
    _
  $region7: #{_joint_post_process_impl.1} parent=0 // pred_check_branch
    %17 = sbr.rel (0) target = $region9
  $region8: #{_joint_post_process_impl.1} parent=0 // pred_region
    _
  $region9: #{_joint_post_process_impl.1} parent=0 // pred_fallthru
    _
  // Predicated region
  $region10: #{_joint_post_process_impl.1} parent=0 // pred_check
    _
  $region11: #{_joint_post_process_impl.1} parent=0 // pred_check_branch
    %19 = sbr.rel (0) target = $region13
  $region12: #{_joint_post_process_impl.1} parent=0 // pred_region
    _
  $region13: #{_joint_post_process_impl.1} parent=0 // pred_fallthru
    _
  // Predicated region
  $region14: #{_joint_post_process_impl.1} parent=0 // pred_check
    _
  $region15: #{_joint_post_process_impl.1} parent=0 // pred_check_branch
    %21 = sbr.rel (0) target = $region17
  $region16: #{_joint_post_process_impl.1} parent=0 // pred_region
    _
  $region17: #{_joint_post_process_impl.1} parent=0 // pred_fallthru
    _
  // Predicated region
  $region18: #{_joint_post_process_impl.1} parent=0 // pred_check
    _
  $region19: #{_joint_post_process_impl.1} parent=0 // pred_check_branch
    %23 = sbr.rel (0) target = $region21
  $region20: #{_joint_post_process_impl.1} parent=0 // pred_region
    _
  $region21: #{_joint_post_process_impl.1} parent=0 // pred_fallthru
    _
  // Predicated region
  $region22: #{_joint_post_process_impl.1} parent=0 // pred_check
    _
  $region23: #{_joint_post_process_impl.1} parent=0 // pred_check_branch
    %25 = sbr.rel (0) target = $region25
  $region24: #{_joint_post_process_impl.1} parent=0 // pred_region
    _
  $region25: #{_joint_post_process_impl.1} parent=0 // pred_fallthru
    _
  // Predicated region
  $region26: #{_joint_post_process_impl.1} parent=0 // pred_check
    _
  $region27: #{_joint_post_process_impl.1} parent=0 // pred_check_branch
    %27 = sbr.rel (0) target = $region29
  $region28: #{_joint_post_process_impl.1} parent=0 // pred_region
    _
  $region29: #{_joint_post_process_impl.1} parent=0 // pred_fallthru
    _
  // Predicated region
  $region30: #{_joint_post_process_impl.1} parent=0 // pred_check
    _
  $region31: #{_joint_post_process_impl.1} parent=0 // pred_check_branch
    %29 = sbr.rel (0) target = $region33
  $region32: #{_joint_post_process_impl.1} parent=0 // pred_region
    _
  $region33: #{_joint_post_process_impl.1} parent=0 // pred_fallthru
    _
  // Predicated region
  $region34: #{_joint_post_process_impl.1} parent=0 // pred_check
    _
  $region35: #{_joint_post_process_impl.1} parent=0 // pred_check_branch
    %31 = sbr.rel (0) target = $region37
  $region36: #{_joint_post_process_impl.1} parent=0 // pred_region
    _
  $region37: #{_joint_post_process_impl.1} parent=0 // pred_fallthru
    _
  %v32 = vld [vmem:[%s0] sm:$0xff]
  %v33 = vld [vmem:[%s0 + $0x8] sm:$0xff]
  %v34 = vld [vmem:[%s2] sm:$0xff]
  %v35 = vld [vmem:[%s2 + $0x8] sm:$0xff]
  %v36 = vld [vmem:[%s2 + $0x10] sm:$0xff]
  %v37 = vld [vmem:[%s2 + $0x18] sm:$0xff]
  %v38 = vld [vmem:[%s2 + $0x20] sm:$0xff]
  %v39 = vld [vmem:[%s2 + $0x28] sm:$0xff]
  %v40 = vld [vmem:[%s2 + $0x30] sm:$0xff]
  %v41 = vld [vmem:[%s2 + $0x38] sm:$0xff]
  %v42 = vld [vmem:[%s2 + $0x40] sm:$0xff]
  %v43 = vld [vmem:[%s2 + $0x48] sm:$0xff]
  %v44 = vld [vmem:[%s2 + $0x50] sm:$0xff]
  %v45 = vld [vmem:[%s2 + $0x58] sm:$0xff]
  %v46 = vld [vmem:[%s4] sm:$0x7]
  %v48 = vlaneseq
  %v49 = vshrl.u32 %v48, 7
  %v50 = vsub.s32 0, %v49
  %v51 = vrot.slane %v46, %v50
  %v52 = vlaneseq
  %v53 = vshrl.u32 %v52, 7
  %v54 = vsub.s32 1, %v53
  %v55 = vrot.slane %v46, %v54
  %v56 = vlaneseq
  %v57 = vshrl.u32 %v56, 7
  %v58 = vsub.s32 2, %v57
  %v59 = vrot.slane %v46, %v58
  %vm63 = vcmask 261120
  %v65 = vsel %vm63, %v32, 0
  %v68 = vsel %vm63, %v33, 0
  %70 = vmatprep.subr.mxu0 0.0
  %71 = vmatpush1.msra.mxu0 0.0
  %72 = vmatprep.subr.mxu0 0.0
  %73 = vmatpush1.msra.mxu0 0.0
  %74 = vmatprep.subr.mxu0 0.0
  %75 = vmatpush1.msra.mxu0 0.0
  %76 = vmatprep.subr.mxu0 0.0
  %77 = vmatpush1.msra.mxu0 0.0
  %78 = vmatprep.subr.mxu0 0.0
  %79 = vmatpush1.msra.mxu0 0.0
  %80 = vmatprep.subr.mxu0 0.0
  %81 = vmatpush1.msra.mxu0 0.0
  %82 = vmatprep.subr.mxu0 0.0
  %83 = vmatpush1.msra.mxu0 0.0
  %84 = vmatprep.subr.mxu0 0.0
  %85 = vmatpush1.msra.mxu0 0.0
  %86 = vmatprep.subr.mxu0 0.0
  %87 = vmatpush1.msra.mxu0 0.0
  %88 = vmatprep.subr.mxu0 0.0
  %89 = vmatpush1.msra.mxu0 0.0
  %90 = vmatprep.subr.mxu0 0.0
  %91 = vmatpush1.msra.mxu0 0.0
  %92 = vmatprep.subr.mxu0 0.0
  %93 = vmatpush1.msra.mxu0 0.0
  %94 = vmatprep.subr.mxu0 %v44
  %95 = vmatpush1.msra.mxu0 %v43
  %96 = vmatprep.subr.mxu0 %v41
  %97 = vmatpush1.msra.mxu0 %v40
  %98 = vmatprep.subr.mxu0 %v38
  %99 = vmatpush1.msra.mxu0 %v37
  %100 = vmatprep.subr.mxu0 %v35
  %101 = vmatpush1.msra.mxu0 %v34
  %102 = vmatprep.subr.mxu0 0.0
  %103 = vmatpush2.msra.mxu0 0.0
  %104 = vmatprep.subr.mxu0 0.0
  %105 = vmatpush2.msra.mxu0 0.0
  %106 = vmatprep.subr.mxu0 0.0
  %107 = vmatpush2.msra.mxu0 0.0
  %108 = vmatprep.subr.mxu0 0.0
  %109 = vmatpush2.msra.mxu0 0.0
  %110 = vmatprep.subr.mxu0 0.0
  %111 = vmatpush2.msra.mxu0 0.0
  %112 = vmatprep.subr.mxu0 0.0
  %113 = vmatpush2.msra.mxu0 0.0
  %114 = vmatprep.subr.mxu0 0.0
  %115 = vmatpush2.msra.mxu0 0.0
  %116 = vmatprep.subr.mxu0 0.0
  %117 = vmatpush2.msra.mxu0 0.0
  %118 = vmatprep.subr.mxu0 0.0
  %119 = vmatpush2.msra.mxu0 0.0
  %120 = vmatprep.subr.mxu0 0.0
  %121 = vmatpush2.msra.mxu0 0.0
  %122 = vmatprep.subr.mxu0 0.0
  %123 = vmatpush2.msra.mxu0 0.0
  %124 = vmatprep.subr.mxu0 0.0
  %125 = vmatpush2.msra.mxu0 0.0
  %126 = vmatprep.subr.mxu0 0.0
  %127 = vmatpush2.msra.mxu0 0.0
  %128 = vmatprep.subr.mxu0 0.0
  %129 = vmatpush2.msra.mxu0 0.0
  %130 = vmatprep.subr.mxu0 0.0
  %131 = vmatpush2.msra.mxu0 0.0
  %132 = vmatprep.subr.mxu0 0.0
  %133 = vmatpush2.msra.mxu0 0.0
  %134 = vmatprep.mubr.f32.mxu0 0.0
  %135 = vmatmul.mubr.f32.gmra.mxu0 %v65
  %v136 = vpop.f32.mrf.mxu0
  %v137 = vadd.f32 %v51, %v136
  %v138 = vpop.f32.mrf.mxu0
  %v139 = vadd.f32 %v55, %v138
  %140 = vmatprep.mubr.f32.mxu0 0.0
  %141 = vmatmul.mubr.f32.gmra.mxu0 %v68
  %v142 = vpop.f32.mrf.mxu0
  %v143 = vadd.f32 %v51, %v142
  %v144 = vpop.f32.mrf.mxu0
  %v145 = vadd.f32 %v55, %v144
  %146 = vdwg.mxu0
  %147 = vmatprep.subr.mxu0 0.0
  %148 = vmatpush1.msra.mxu0 0.0
  %149 = vmatprep.subr.mxu0 0.0
  %150 = vmatpush1.msra.mxu0 0.0
  %151 = vmatprep.subr.mxu0 0.0
  %152 = vmatpush1.msra.mxu0 0.0
  %153 = vmatprep.subr.mxu0 0.0
  %154 = vmatpush1.msra.mxu0 0.0
  %155 = vmatprep.subr.mxu0 0.0
  %156 = vmatpush1.msra.mxu0 0.0
  %157 = vmatprep.subr.mxu0 0.0
  %158 = vmatpush1.msra.mxu0 0.0
  %159 = vmatprep.subr.mxu0 0.0
  %160 = vmatpush1.msra.mxu0 0.0
  %161 = vmatprep.subr.mxu0 0.0
  %162 = vmatpush1.msra.mxu0 0.0
  %163 = vmatprep.subr.mxu0 0.0
  %164 = vmatpush1.msra.mxu0 0.0
  %165 = vmatprep.subr.mxu0 0.0
  %166 = vmatpush1.msra.mxu0 0.0
  %167 = vmatprep.subr.mxu0 0.0
  %168 = vmatpush1.msra.mxu0 0.0
  %169 = vmatprep.subr.mxu0 0.0
  %170 = vmatpush1.msra.mxu0 0.0
  %171 = vmatprep.subr.mxu0 0.0
  %172 = vmatpush1.msra.mxu0 %v45
  %173 = vmatprep.subr.mxu0 0.0
  %174 = vmatpush1.msra.mxu0 %v42
  %175 = vmatprep.subr.mxu0 0.0
  %176 = vmatpush1.msra.mxu0 %v39
  %177 = vmatprep.subr.mxu0 0.0
  %178 = vmatpush1.msra.mxu0 %v36
  %179 = vmatprep.subr.mxu0 0.0
  %180 = vmatpush2.msra.mxu0 0.0
  %181 = vmatprep.subr.mxu0 0.0
  %182 = vmatpush2.msra.mxu0 0.0
  %183 = vmatprep.subr.mxu0 0.0
  %184 = vmatpush2.msra.mxu0 0.0
  %185 = vmatprep.subr.mxu0 0.0
  %186 = vmatpush2.msra.mxu0 0.0
  %187 = vmatprep.subr.mxu0 0.0
  %188 = vmatpush2.msra.mxu0 0.0
  %189 = vmatprep.subr.mxu0 0.0
  %190 = vmatpush2.msra.mxu0 0.0
  %191 = vmatprep.subr.mxu0 0.0
  %192 = vmatpush2.msra.mxu0 0.0
  %193 = vmatprep.subr.mxu0 0.0
  %194 = vmatpush2.msra.mxu0 0.0
  %195 = vmatprep.subr.mxu0 0.0
  %196 = vmatpush2.msra.mxu0 0.0
  %197 = vmatprep.subr.mxu0 0.0
  %198 = vmatpush2.msra.mxu0 0.0
  %199 = vmatprep.subr.mxu0 0.0
  %200 = vmatpush2.msra.mxu0 0.0
  %201 = vmatprep.subr.mxu0 0.0
  %202 = vmatpush2.msra.mxu0 0.0
  %203 = vmatprep.subr.mxu0 0.0
  %204 = vmatpush2.msra.mxu0 0.0
  %205 = vmatprep.subr.mxu0 0.0
  %206 = vmatpush2.msra.mxu0 0.0
  %207 = vmatprep.subr.mxu0 0.0
  %208 = vmatpush2.msra.mxu0 0.0
  %209 = vmatprep.subr.mxu0 0.0
  %210 = vmatpush2.msra.mxu0 0.0
  %211 = vmatprep.mubr.f32.mxu0 0.0
  %212 = vmatmul.mubr.f32.gmra.mxu0 %v65
  %v213 = vpop.f32.mrf.mxu0
  %v214 = vadd.f32 %v59, %v213
  %v215 = vpop.f32.mrf.mxu0
  %216 = vmatprep.mubr.f32.mxu0 0.0
  %217 = vmatmul.mubr.f32.gmra.mxu0 %v68
  %v218 = vpop.f32.mrf.mxu0
  %v219 = vadd.f32 %v59, %v218
  %v220 = vpop.f32.mrf.mxu0
  %221 = vdwg.mxu0
  %v222 = vld [vmem:[%s3] sm:$0xff]
  %v223 = vld [vmem:[%s3 + $0x8] sm:$0xff]
  %v224 = vld [vmem:[%s3 + $0x10] sm:$0xff]
  %v225 = vld [vmem:[%s3 + $0x18] sm:$0xff]
  %v226 = vld [vmem:[%s3 + $0x20] sm:$0xff]
  %v227 = vld [vmem:[%s3 + $0x28] sm:$0xff]
  %v228 = vld [vmem:[%s3 + $0x30] sm:$0xff]
  %v229 = vld [vmem:[%s3 + $0x38] sm:$0xff]
  %v230 = vld [vmem:[%s3 + $0x40] sm:$0xff]
  %v231 = vld [vmem:[%s3 + $0x48] sm:$0xff]
  %v232 = vld [vmem:[%s3 + $0x50] sm:$0xff]
  %v233 = vld [vmem:[%s3 + $0x58] sm:$0xff]
  %v234 = vld [vmem:[%s3 + $0x60] sm:$0xff]
  %v235 = vld [vmem:[%s3 + $0x68] sm:$0xff]
  %v236 = vld [vmem:[%s3 + $0x70] sm:$0xff]
  %v237 = vld [vmem:[%s3 + $0x78] sm:$0xff]
  %v238 = vld [vmem:[%s3 + $0x80] sm:$0xff]
  %v239 = vld [vmem:[%s3 + $0x88] sm:$0xff]
  %v240 = vld [vmem:[%s3 + $0x90] sm:$0xff]
  %v241 = vld [vmem:[%s3 + $0x98] sm:$0xff]
  %v242 = vld [vmem:[%s3 + $0xa0] sm:$0xff]
  %v243 = vld [vmem:[%s3 + $0xa8] sm:$0xff]
  %v244 = vld [vmem:[%s3 + $0xb0] sm:$0xff]
  %v245 = vld [vmem:[%s3 + $0xb8] sm:$0xff]
  %v246 = vld [vmem:[%s3 + $0xc0] sm:$0xff]
  %v247 = vld [vmem:[%s3 + $0xc8] sm:$0xff]
  %v248 = vld [vmem:[%s3 + $0xd0] sm:$0xff]
  %v249 = vld [vmem:[%s3 + $0xd8] sm:$0xff]
  %v250 = vld [vmem:[%s3 + $0xe0] sm:$0xff]
  %v251 = vld [vmem:[%s3 + $0xe8] sm:$0xff]
  %v252 = vld [vmem:[%s3 + $0xf0] sm:$0xff]
  %v253 = vld [vmem:[%s3 + $0xf8] sm:$0xff]
  %v254 = vld [vmem:[%s3 + $0x100] sm:$0xff]
  %v255 = vld [vmem:[%s3 + $0x108] sm:$0xff]
  %v256 = vld [vmem:[%s3 + $0x110] sm:$0xff]
  %v257 = vld [vmem:[%s3 + $0x118] sm:$0xff]
  %v258 = vld [vmem:[%s3 + $0x120] sm:$0xff]
  %v259 = vld [vmem:[%s3 + $0x128] sm:$0xff]
  %v260 = vld [vmem:[%s3 + $0x130] sm:$0xff]
  %v261 = vld [vmem:[%s3 + $0x138] sm:$0xff]
  %v262 = vld [vmem:[%s3 + $0x140] sm:$0xff]
  %v263 = vld [vmem:[%s3 + $0x148] sm:$0xff]
  %v264 = vld [vmem:[%s3 + $0x150] sm:$0xff]
  %v265 = vld [vmem:[%s3 + $0x158] sm:$0xff]
  %v266 = vld [vmem:[%s3 + $0x160] sm:$0xff]
  %v267 = vld [vmem:[%s3 + $0x168] sm:$0xff]
  %v268 = vld [vmem:[%s3 + $0x170] sm:$0xff]
  %v269 = vld [vmem:[%s3 + $0x178] sm:$0xff]
  %v270 = vld [vmem:[%s5] sm:$0x1]
  %v272 = vlaneseq
  %v273 = vshrl.u32 %v272, 7
  %v274 = vsub.s32 0, %v273
  %v275 = vrot.slane %v270, %v274
  %v277 = vld [vmem:[%s6] sm:$0x3]
  %278 = vmatprep.subr.mxu0 %v268
  %279 = vmatpush1.msra.mxu0 %v267
  %280 = vmatprep.subr.mxu0 %v265
  %281 = vmatpush1.msra.mxu0 %v264
  %282 = vmatprep.subr.mxu0 %v262
  %283 = vmatpush1.msra.mxu0 %v261
  %284 = vmatprep.subr.mxu0 %v259
  %285 = vmatpush1.msra.mxu0 %v258
  %286 = vmatprep.subr.mxu0 %v256
  %287 = vmatpush1.msra.mxu0 %v255
  %288 = vmatprep.subr.mxu0 %v253
  %289 = vmatpush1.msra.mxu0 %v252
  %290 = vmatprep.subr.mxu0 %v250
  %291 = vmatpush1.msra.mxu0 %v249
  %292 = vmatprep.subr.mxu0 %v247
  %293 = vmatpush1.msra.mxu0 %v246
  %294 = vmatprep.subr.mxu0 %v244
  %295 = vmatpush1.msra.mxu0 %v243
  %296 = vmatprep.subr.mxu0 %v241
  %297 = vmatpush1.msra.mxu0 %v240
  %298 = vmatprep.subr.mxu0 %v238
  %299 = vmatpush1.msra.mxu0 %v237
  %300 = vmatprep.subr.mxu0 %v235
  %301 = vmatpush1.msra.mxu0 %v234
  %302 = vmatprep.subr.mxu0 %v232
  %303 = vmatpush1.msra.mxu0 %v231
  %304 = vmatprep.subr.mxu0 %v229
  %305 = vmatpush1.msra.mxu0 %v228
  %306 = vmatprep.subr.mxu0 %v226
  %307 = vmatpush1.msra.mxu0 %v225
  %308 = vmatprep.subr.mxu0 %v223
  %309 = vmatpush1.msra.mxu0 %v222
  %310 = vmatprep.subr.mxu0 0.0
  %311 = vmatpush2.msra.mxu0 0.0
  %312 = vmatprep.subr.mxu0 0.0
  %313 = vmatpush2.msra.mxu0 0.0
  %314 = vmatprep.subr.mxu0 0.0
  %315 = vmatpush2.msra.mxu0 0.0
  %316 = vmatprep.subr.mxu0 0.0
  %317 = vmatpush2.msra.mxu0 0.0
  %318 = vmatprep.subr.mxu0 0.0
  %319 = vmatpush2.msra.mxu0 0.0
  %320 = vmatprep.subr.mxu0 0.0
  %321 = vmatpush2.msra.mxu0 0.0
  %322 = vmatprep.subr.mxu0 0.0
  %323 = vmatpush2.msra.mxu0 0.0
  %324 = vmatprep.subr.mxu0 0.0
  %325 = vmatpush2.msra.mxu0 0.0
  %326 = vmatprep.subr.mxu0 0.0
  %327 = vmatpush2.msra.mxu0 0.0
  %328 = vmatprep.subr.mxu0 0.0
  %329 = vmatpush2.msra.mxu0 0.0
  %330 = vmatprep.subr.mxu0 0.0
  %331 = vmatpush2.msra.mxu0 0.0
  %332 = vmatprep.subr.mxu0 0.0
  %333 = vmatpush2.msra.mxu0 0.0
  %334 = vmatprep.subr.mxu0 0.0
  %335 = vmatpush2.msra.mxu0 0.0
  %336 = vmatprep.subr.mxu0 0.0
  %337 = vmatpush2.msra.mxu0 0.0
  %338 = vmatprep.subr.mxu0 0.0
  %339 = vmatpush2.msra.mxu0 0.0
  %340 = vmatprep.subr.mxu0 0.0
  %341 = vmatpush2.msra.mxu0 0.0
  %342 = vmatprep.mubr.f32.mxu0 0.0
  %343 = vmatmul.mubr.f32.gmra.mxu0 %v277
  %v344 = vpop.f32.mrf.mxu0
  %v345 = vadd.f32 0.0, %v344
  %v346 = vpop.f32.mrf.mxu0
  %v347 = vadd.f32 0.0, %v346
  %348 = vdwg.mxu0
  %349 = vmatprep.subr.mxu0 0.0
  %350 = vmatpush1.msra.mxu0 %v269
  %351 = vmatprep.subr.mxu0 0.0
  %352 = vmatpush1.msra.mxu0 %v266
  %353 = vmatprep.subr.mxu0 0.0
  %354 = vmatpush1.msra.mxu0 %v263
  %355 = vmatprep.subr.mxu0 0.0
  %356 = vmatpush1.msra.mxu0 %v260
  %357 = vmatprep.subr.mxu0 0.0
  %358 = vmatpush1.msra.mxu0 %v257
  %359 = vmatprep.subr.mxu0 0.0
  %360 = vmatpush1.msra.mxu0 %v254
  %361 = vmatprep.subr.mxu0 0.0
  %362 = vmatpush1.msra.mxu0 %v251
  %363 = vmatprep.subr.mxu0 0.0
  %364 = vmatpush1.msra.mxu0 %v248
  %365 = vmatprep.subr.mxu0 0.0
  %366 = vmatpush1.msra.mxu0 %v245
  %367 = vmatprep.subr.mxu0 0.0
  %368 = vmatpush1.msra.mxu0 %v242
  %369 = vmatprep.subr.mxu0 0.0
  %370 = vmatpush1.msra.mxu0 %v239
  %371 = vmatprep.subr.mxu0 0.0
  %372 = vmatpush1.msra.mxu0 %v236
  %373 = vmatprep.subr.mxu0 0.0
  %374 = vmatpush1.msra.mxu0 %v233
  %375 = vmatprep.subr.mxu0 0.0
  %376 = vmatpush1.msra.mxu0 %v230
  %377 = vmatprep.subr.mxu0 0.0
  %378 = vmatpush1.msra.mxu0 %v227
  %379 = vmatprep.subr.mxu0 0.0
  %380 = vmatpush1.msra.mxu0 %v224
  %381 = vmatprep.subr.mxu0 0.0
  %382 = vmatpush2.msra.mxu0 0.0
  %383 = vmatprep.subr.mxu0 0.0
  %384 = vmatpush2.msra.mxu0 0.0
  %385 = vmatprep.subr.mxu0 0.0
  %386 = vmatpush2.msra.mxu0 0.0
  %387 = vmatprep.subr.mxu0 0.0
  %388 = vmatpush2.msra.mxu0 0.0
  %389 = vmatprep.subr.mxu0 0.0
  %390 = vmatpush2.msra.mxu0 0.0
  %391 = vmatprep.subr.mxu0 0.0
  %392 = vmatpush2.msra.mxu0 0.0
  %393 = vmatprep.subr.mxu0 0.0
  %394 = vmatpush2.msra.mxu0 0.0
  %395 = vmatprep.subr.mxu0 0.0
  %396 = vmatpush2.msra.mxu0 0.0
  %397 = vmatprep.subr.mxu0 0.0
  %398 = vmatpush2.msra.mxu0 0.0
  %399 = vmatprep.subr.mxu0 0.0
  %400 = vmatpush2.msra.mxu0 0.0
  %401 = vmatprep.subr.mxu0 0.0
  %402 = vmatpush2.msra.mxu0 0.0
  %403 = vmatprep.subr.mxu0 0.0
  %404 = vmatpush2.msra.mxu0 0.0
  %405 = vmatprep.subr.mxu0 0.0
  %406 = vmatpush2.msra.mxu0 0.0
  %407 = vmatprep.subr.mxu0 0.0
  %408 = vmatpush2.msra.mxu0 0.0
  %409 = vmatprep.subr.mxu0 0.0
  %410 = vmatpush2.msra.mxu0 0.0
  %411 = vmatprep.subr.mxu0 0.0
  %412 = vmatpush2.msra.mxu0 0.0
  %413 = vmatprep.mubr.f32.mxu0 0.0
  %414 = vmatmul.mubr.f32.gmra.mxu0 %v277
  %v415 = vpop.f32.mrf.mxu0
  %v416 = vadd.f32 0.0, %v415
  %v417 = vpop.f32.mrf.mxu0
  %418 = vdwg.mxu0
  %v419 = vadd.f32 %v137, %v345
  %v420 = vxor.u32 %v419, 2147483648
  %v421 = vmul.f32 %v420, 1.442695
  %v422 = vpow.pop %v421
  %v423 = vadd.f32 %v422, 1.0
  %v424 = vrcp.pop %v423
  %v425 = vmul.f32 1.0, %v424
  %v426 = vadd.f32 %v139, %v347
  %v427 = vxor.u32 %v426, 2147483648
  %v428 = vmul.f32 %v427, 1.442695
  %v429 = vpow.pop %v428
  %v430 = vadd.f32 %v429, 1.0
  %v431 = vrcp.pop %v430
  %v432 = vmul.f32 1.0, %v431
  %v433 = vadd.f32 %v416, %v275
  %v434 = vmul.f32 %v425, %v433
  %v435 = vadd.f32 %v214, %v434
  %v436 = vtanh.pop %v435
  %v437 = vsub.f32 1.0, %v432
  %v438 = vmul.f32 %v437, %v436
  %v439 = vmul.f32 %v432, %v277
  %v440 = vadd.f32 %v438, %v439
  %441 = vmatprep.subr.mxu0 %v268
  %442 = vmatpush1.msra.mxu0 %v267
  %443 = vmatprep.subr.mxu0 %v265
  %444 = vmatpush1.msra.mxu0 %v264
  %445 = vmatprep.subr.mxu0 %v262
  %446 = vmatpush1.msra.mxu0 %v261
  %447 = vmatprep.subr.mxu0 %v259
  %448 = vmatpush1.msra.mxu0 %v258
  %449 = vmatprep.subr.mxu0 %v256
  %450 = vmatpush1.msra.mxu0 %v255
  %451 = vmatprep.subr.mxu0 %v253
  %452 = vmatpush1.msra.mxu0 %v252
  %453 = vmatprep.subr.mxu0 %v250
  %454 = vmatpush1.msra.mxu0 %v249
  %455 = vmatprep.subr.mxu0 %v247
  %456 = vmatpush1.msra.mxu0 %v246
  %457 = vmatprep.subr.mxu0 %v244
  %458 = vmatpush1.msra.mxu0 %v243
  %459 = vmatprep.subr.mxu0 %v241
  %460 = vmatpush1.msra.mxu0 %v240
  %461 = vmatprep.subr.mxu0 %v238
  %462 = vmatpush1.msra.mxu0 %v237
  %463 = vmatprep.subr.mxu0 %v235
  %464 = vmatpush1.msra.mxu0 %v234
  %465 = vmatprep.subr.mxu0 %v232
  %466 = vmatpush1.msra.mxu0 %v231
  %467 = vmatprep.subr.mxu0 %v229
  %468 = vmatpush1.msra.mxu0 %v228
  %469 = vmatprep.subr.mxu0 %v226
  %470 = vmatpush1.msra.mxu0 %v225
  %471 = vmatprep.subr.mxu0 %v223
  %472 = vmatpush1.msra.mxu0 %v222
  %473 = vmatprep.subr.mxu0 0.0
  %474 = vmatpush2.msra.mxu0 0.0
  %475 = vmatprep.subr.mxu0 0.0
  %476 = vmatpush2.msra.mxu0 0.0
  %477 = vmatprep.subr.mxu0 0.0
  %478 = vmatpush2.msra.mxu0 0.0
  %479 = vmatprep.subr.mxu0 0.0
  %480 = vmatpush2.msra.mxu0 0.0
  %481 = vmatprep.subr.mxu0 0.0
  %482 = vmatpush2.msra.mxu0 0.0
  %483 = vmatprep.subr.mxu0 0.0
  %484 = vmatpush2.msra.mxu0 0.0
  %485 = vmatprep.subr.mxu0 0.0
  %486 = vmatpush2.msra.mxu0 0.0
  %487 = vmatprep.subr.mxu0 0.0
  %488 = vmatpush2.msra.mxu0 0.0
  %489 = vmatprep.subr.mxu0 0.0
  %490 = vmatpush2.msra.mxu0 0.0
  %491 = vmatprep.subr.mxu0 0.0
  %492 = vmatpush2.msra.mxu0 0.0
  %493 = vmatprep.subr.mxu0 0.0
  %494 = vmatpush2.msra.mxu0 0.0
  %495 = vmatprep.subr.mxu0 0.0
  %496 = vmatpush2.msra.mxu0 0.0
  %497 = vmatprep.subr.mxu0 0.0
  %498 = vmatpush2.msra.mxu0 0.0
  %499 = vmatprep.subr.mxu0 0.0
  %500 = vmatpush2.msra.mxu0 0.0
  %501 = vmatprep.subr.mxu0 0.0
  %502 = vmatpush2.msra.mxu0 0.0
  %503 = vmatprep.subr.mxu0 0.0
  %504 = vmatpush2.msra.mxu0 0.0
  %505 = vmatprep.mubr.f32.mxu0 0.0
  %506 = vmatmul.mubr.f32.gmra.mxu0 %v440
  %v507 = vpop.f32.mrf.mxu0
  %v508 = vadd.f32 0.0, %v507
  %v509 = vpop.f32.mrf.mxu0
  %v510 = vadd.f32 0.0, %v509
  %511 = vdwg.mxu0
  %512 = vmatprep.subr.mxu0 0.0
  %513 = vmatpush1.msra.mxu0 %v269
  %514 = vmatprep.subr.mxu0 0.0
  %515 = vmatpush1.msra.mxu0 %v266
  %516 = vmatprep.subr.mxu0 0.0
  %517 = vmatpush1.msra.mxu0 %v263
  %518 = vmatprep.subr.mxu0 0.0
  %519 = vmatpush1.msra.mxu0 %v260
  %520 = vmatprep.subr.mxu0 0.0
  %521 = vmatpush1.msra.mxu0 %v257
  %522 = vmatprep.subr.mxu0 0.0
  %523 = vmatpush1.msra.mxu0 %v254
  %524 = vmatprep.subr.mxu0 0.0
  %525 = vmatpush1.msra.mxu0 %v251
  %526 = vmatprep.subr.mxu0 0.0
  %527 = vmatpush1.msra.mxu0 %v248
  %528 = vmatprep.subr.mxu0 0.0
  %529 = vmatpush1.msra.mxu0 %v245
  %530 = vmatprep.subr.mxu0 0.0
  %531 = vmatpush1.msra.mxu0 %v242
  %532 = vmatprep.subr.mxu0 0.0
  %533 = vmatpush1.msra.mxu0 %v239
  %534 = vmatprep.subr.mxu0 0.0
  %535 = vmatpush1.msra.mxu0 %v236
  %536 = vmatprep.subr.mxu0 0.0
  %537 = vmatpush1.msra.mxu0 %v233
  %538 = vmatprep.subr.mxu0 0.0
  %539 = vmatpush1.msra.mxu0 %v230
  %540 = vmatprep.subr.mxu0 0.0
  %541 = vmatpush1.msra.mxu0 %v227
  %542 = vmatprep.subr.mxu0 0.0
  %543 = vmatpush1.msra.mxu0 %v224
  %544 = vmatprep.subr.mxu0 0.0
  %545 = vmatpush2.msra.mxu0 0.0
  %546 = vmatprep.subr.mxu0 0.0
  %547 = vmatpush2.msra.mxu0 0.0
  %548 = vmatprep.subr.mxu0 0.0
  %549 = vmatpush2.msra.mxu0 0.0
  %550 = vmatprep.subr.mxu0 0.0
  %551 = vmatpush2.msra.mxu0 0.0
  %552 = vmatprep.subr.mxu0 0.0
  %553 = vmatpush2.msra.mxu0 0.0
  %554 = vmatprep.subr.mxu0 0.0
  %555 = vmatpush2.msra.mxu0 0.0
  %556 = vmatprep.subr.mxu0 0.0
  %557 = vmatpush2.msra.mxu0 0.0
  %558 = vmatprep.subr.mxu0 0.0
  %559 = vmatpush2.msra.mxu0 0.0
  %560 = vmatprep.subr.mxu0 0.0
  %561 = vmatpush2.msra.mxu0 0.0
  %562 = vmatprep.subr.mxu0 0.0
  %563 = vmatpush2.msra.mxu0 0.0
  %564 = vmatprep.subr.mxu0 0.0
  %565 = vmatpush2.msra.mxu0 0.0
  %566 = vmatprep.subr.mxu0 0.0
  %567 = vmatpush2.msra.mxu0 0.0
  %568 = vmatprep.subr.mxu0 0.0
  %569 = vmatpush2.msra.mxu0 0.0
  %570 = vmatprep.subr.mxu0 0.0
  %571 = vmatpush2.msra.mxu0 0.0
  %572 = vmatprep.subr.mxu0 0.0
  %573 = vmatpush2.msra.mxu0 0.0
  %574 = vmatprep.subr.mxu0 0.0
  %575 = vmatpush2.msra.mxu0 0.0
  %576 = vmatprep.mubr.f32.mxu0 0.0
  %577 = vmatmul.mubr.f32.gmra.mxu0 %v440
  %v578 = vpop.f32.mrf.mxu0
  %v579 = vadd.f32 0.0, %v578
  %v580 = vpop.f32.mrf.mxu0
  %581 = vdwg.mxu0
  %v583 = vrot.slane %v508, 6
  %v585 = vadd.f32 %v137, %v583
  %v586 = vxor.u32 %v585, 2147483648
  %v587 = vmul.f32 %v586, 1.442695
  %v588 = vpow.pop %v587
  %v589 = vadd.f32 %v588, 1.0
  %v590 = vrcp.pop %v589
  %v591 = vmul.f32 1.0, %v590
  %v593 = vrot.slane %v510, 6
  %v595 = vadd.f32 %v139, %v593
  %v596 = vxor.u32 %v595, 2147483648
  %v597 = vmul.f32 %v596, 1.442695
  %v598 = vpow.pop %v597
  %v599 = vadd.f32 %v598, 1.0
  %v600 = vrcp.pop %v599
  %v601 = vmul.f32 1.0, %v600
  %v602 = vadd.f32 %v579, %v275
  %v604 = vrot.slane %v602, 6
  %v606 = vmul.f32 %v591, %v604
  %v607 = vadd.f32 %v214, %v606
  %v608 = vtanh.pop %v607
  %v609 = vsub.f32 1.0, %v601
  %v610 = vmul.f32 %v609, %v608
  %v612 = vrot.slane %v440, 6
  %v614 = vmul.f32 %v601, %v612
  %v615 = vadd.f32 %v610, %v614
  %v617 = vrot.slane %v615, 2
  %619 = vmatprep.subr.mxu0 %v268
  %620 = vmatpush1.msra.mxu0 %v267
  %621 = vmatprep.subr.mxu0 %v265
  %622 = vmatpush1.msra.mxu0 %v264
  %623 = vmatprep.subr.mxu0 %v262
  %624 = vmatpush1.msra.mxu0 %v261
  %625 = vmatprep.subr.mxu0 %v259
  %626 = vmatpush1.msra.mxu0 %v258
  %627 = vmatprep.subr.mxu0 %v256
  %628 = vmatpush1.msra.mxu0 %v255
  %629 = vmatprep.subr.mxu0 %v253
  %630 = vmatpush1.msra.mxu0 %v252
  %631 = vmatprep.subr.mxu0 %v250
  %632 = vmatpush1.msra.mxu0 %v249
  %633 = vmatprep.subr.mxu0 %v247
  %634 = vmatpush1.msra.mxu0 %v246
  %635 = vmatprep.subr.mxu0 %v244
  %636 = vmatpush1.msra.mxu0 %v243
  %637 = vmatprep.subr.mxu0 %v241
  %638 = vmatpush1.msra.mxu0 %v240
  %639 = vmatprep.subr.mxu0 %v238
  %640 = vmatpush1.msra.mxu0 %v237
  %641 = vmatprep.subr.mxu0 %v235
  %642 = vmatpush1.msra.mxu0 %v234
  %643 = vmatprep.subr.mxu0 %v232
  %644 = vmatpush1.msra.mxu0 %v231
  %645 = vmatprep.subr.mxu0 %v229
  %646 = vmatpush1.msra.mxu0 %v228
  %647 = vmatprep.subr.mxu0 %v226
  %648 = vmatpush1.msra.mxu0 %v225
  %649 = vmatprep.subr.mxu0 %v223
  %650 = vmatpush1.msra.mxu0 %v222
  %651 = vmatprep.subr.mxu0 0.0
  %652 = vmatpush2.msra.mxu0 0.0
  %653 = vmatprep.subr.mxu0 0.0
  %654 = vmatpush2.msra.mxu0 0.0
  %655 = vmatprep.subr.mxu0 0.0
  %656 = vmatpush2.msra.mxu0 0.0
  %657 = vmatprep.subr.mxu0 0.0
  %658 = vmatpush2.msra.mxu0 0.0
  %659 = vmatprep.subr.mxu0 0.0
  %660 = vmatpush2.msra.mxu0 0.0
  %661 = vmatprep.subr.mxu0 0.0
  %662 = vmatpush2.msra.mxu0 0.0
  %663 = vmatprep.subr.mxu0 0.0
  %664 = vmatpush2.msra.mxu0 0.0
  %665 = vmatprep.subr.mxu0 0.0
  %666 = vmatpush2.msra.mxu0 0.0
  %667 = vmatprep.subr.mxu0 0.0
  %668 = vmatpush2.msra.mxu0 0.0
  %669 = vmatprep.subr.mxu0 0.0
  %670 = vmatpush2.msra.mxu0 0.0
  %671 = vmatprep.subr.mxu0 0.0
  %672 = vmatpush2.msra.mxu0 0.0
  %673 = vmatprep.subr.mxu0 0.0
  %674 = vmatpush2.msra.mxu0 0.0
  %675 = vmatprep.subr.mxu0 0.0
  %676 = vmatpush2.msra.mxu0 0.0
  %677 = vmatprep.subr.mxu0 0.0
  %678 = vmatpush2.msra.mxu0 0.0
  %679 = vmatprep.subr.mxu0 0.0
  %680 = vmatpush2.msra.mxu0 0.0
  %681 = vmatprep.subr.mxu0 0.0
  %682 = vmatpush2.msra.mxu0 0.0
  %683 = vmatprep.mubr.f32.mxu0 0.0
  %684 = vmatmul.mubr.f32.gmra.mxu0 %v617
  %v685 = vpop.f32.mrf.mxu0
  %v686 = vadd.f32 0.0, %v685
  %v687 = vpop.f32.mrf.mxu0
  %v688 = vadd.f32 0.0, %v687
  %689 = vdwg.mxu0
  %690 = vmatprep.subr.mxu0 0.0
  %691 = vmatpush1.msra.mxu0 %v269
  %692 = vmatprep.subr.mxu0 0.0
  %693 = vmatpush1.msra.mxu0 %v266
  %694 = vmatprep.subr.mxu0 0.0
  %695 = vmatpush1.msra.mxu0 %v263
  %696 = vmatprep.subr.mxu0 0.0
  %697 = vmatpush1.msra.mxu0 %v260
  %698 = vmatprep.subr.mxu0 0.0
  %699 = vmatpush1.msra.mxu0 %v257
  %700 = vmatprep.subr.mxu0 0.0
  %701 = vmatpush1.msra.mxu0 %v254
  %702 = vmatprep.subr.mxu0 0.0
  %703 = vmatpush1.msra.mxu0 %v251
  %704 = vmatprep.subr.mxu0 0.0
  %705 = vmatpush1.msra.mxu0 %v248
  %706 = vmatprep.subr.mxu0 0.0
  %707 = vmatpush1.msra.mxu0 %v245
  %708 = vmatprep.subr.mxu0 0.0
  %709 = vmatpush1.msra.mxu0 %v242
  %710 = vmatprep.subr.mxu0 0.0
  %711 = vmatpush1.msra.mxu0 %v239
  %712 = vmatprep.subr.mxu0 0.0
  %713 = vmatpush1.msra.mxu0 %v236
  %714 = vmatprep.subr.mxu0 0.0
  %715 = vmatpush1.msra.mxu0 %v233
  %716 = vmatprep.subr.mxu0 0.0
  %717 = vmatpush1.msra.mxu0 %v230
  %718 = vmatprep.subr.mxu0 0.0
  %719 = vmatpush1.msra.mxu0 %v227
  %720 = vmatprep.subr.mxu0 0.0
  %721 = vmatpush1.msra.mxu0 %v224
  %722 = vmatprep.subr.mxu0 0.0
  %723 = vmatpush2.msra.mxu0 0.0
  %724 = vmatprep.subr.mxu0 0.0
  %725 = vmatpush2.msra.mxu0 0.0
  %726 = vmatprep.subr.mxu0 0.0
  %727 = vmatpush2.msra.mxu0 0.0
  %728 = vmatprep.subr.mxu0 0.0
  %729 = vmatpush2.msra.mxu0 0.0
  %730 = vmatprep.subr.mxu0 0.0
  %731 = vmatpush2.msra.mxu0 0.0
  %732 = vmatprep.subr.mxu0 0.0
  %733 = vmatpush2.msra.mxu0 0.0
  %734 = vmatprep.subr.mxu0 0.0
  %735 = vmatpush2.msra.mxu0 0.0
  %736 = vmatprep.subr.mxu0 0.0
  %737 = vmatpush2.msra.mxu0 0.0
  %738 = vmatprep.subr.mxu0 0.0
  %739 = vmatpush2.msra.mxu0 0.0
  %740 = vmatprep.subr.mxu0 0.0
  %741 = vmatpush2.msra.mxu0 0.0
  %742 = vmatprep.subr.mxu0 0.0
  %743 = vmatpush2.msra.mxu0 0.0
  %744 = vmatprep.subr.mxu0 0.0
  %745 = vmatpush2.msra.mxu0 0.0
  %746 = vmatprep.subr.mxu0 0.0
  %747 = vmatpush2.msra.mxu0 0.0
  %748 = vmatprep.subr.mxu0 0.0
  %749 = vmatpush2.msra.mxu0 0.0
  %750 = vmatprep.subr.mxu0 0.0
  %751 = vmatpush2.msra.mxu0 0.0
  %752 = vmatprep.subr.mxu0 0.0
  %753 = vmatpush2.msra.mxu0 0.0
  %754 = vmatprep.mubr.f32.mxu0 0.0
  %755 = vmatmul.mubr.f32.gmra.mxu0 %v617
  %v756 = vpop.f32.mrf.mxu0
  %v757 = vadd.f32 0.0, %v756
  %v758 = vpop.f32.mrf.mxu0
  %759 = vdwg.mxu0
  %v761 = vrot.slane %v686, 4
  %v763 = vadd.f32 %v137, %v761
  %v764 = vxor.u32 %v763, 2147483648
  %v765 = vmul.f32 %v764, 1.442695
  %v766 = vpow.pop %v765
  %v767 = vadd.f32 %v766, 1.0
  %v768 = vrcp.pop %v767
  %v769 = vmul.f32 1.0, %v768
  %v771 = vrot.slane %v688, 4
  %v773 = vadd.f32 %v139, %v771
  %v774 = vxor.u32 %v773, 2147483648
  %v775 = vmul.f32 %v774, 1.442695
  %v776 = vpow.pop %v775
  %v777 = vadd.f32 %v776, 1.0
  %v778 = vrcp.pop %v777
  %v779 = vmul.f32 1.0, %v778
  %v780 = vadd.f32 %v757, %v275
  %v782 = vrot.slane %v780, 4
  %v784 = vmul.f32 %v769, %v782
  %v785 = vadd.f32 %v214, %v784
  %v786 = vtanh.pop %v785
  %v787 = vsub.f32 1.0, %v779
  %v788 = vmul.f32 %v787, %v786
  %v789 = vrot.slane %v615, 6
  %v791 = vmul.f32 %v779, %v789
  %v792 = vadd.f32 %v788, %v791
  %v794 = vrot.slane %v792, 4
  %796 = vmatprep.subr.mxu0 %v268
  %797 = vmatpush1.msra.mxu0 %v267
  %798 = vmatprep.subr.mxu0 %v265
  %799 = vmatpush1.msra.mxu0 %v264
  %800 = vmatprep.subr.mxu0 %v262
  %801 = vmatpush1.msra.mxu0 %v261
  %802 = vmatprep.subr.mxu0 %v259
  %803 = vmatpush1.msra.mxu0 %v258
  %804 = vmatprep.subr.mxu0 %v256
  %805 = vmatpush1.msra.mxu0 %v255
  %806 = vmatprep.subr.mxu0 %v253
  %807 = vmatpush1.msra.mxu0 %v252
  %808 = vmatprep.subr.mxu0 %v250
  %809 = vmatpush1.msra.mxu0 %v249
  %810 = vmatprep.subr.mxu0 %v247
  %811 = vmatpush1.msra.mxu0 %v246
  %812 = vmatprep.subr.mxu0 %v244
  %813 = vmatpush1.msra.mxu0 %v243
  %814 = vmatprep.subr.mxu0 %v241
  %815 = vmatpush1.msra.mxu0 %v240
  %816 = vmatprep.subr.mxu0 %v238
  %817 = vmatpush1.msra.mxu0 %v237
  %818 = vmatprep.subr.mxu0 %v235
  %819 = vmatpush1.msra.mxu0 %v234
  %820 = vmatprep.subr.mxu0 %v232
  %821 = vmatpush1.msra.mxu0 %v231
  %822 = vmatprep.subr.mxu0 %v229
  %823 = vmatpush1.msra.mxu0 %v228
  %824 = vmatprep.subr.mxu0 %v226
  %825 = vmatpush1.msra.mxu0 %v225
  %826 = vmatprep.subr.mxu0 %v223
  %827 = vmatpush1.msra.mxu0 %v222
  %828 = vmatprep.subr.mxu0 0.0
  %829 = vmatpush2.msra.mxu0 0.0
  %830 = vmatprep.subr.mxu0 0.0
  %831 = vmatpush2.msra.mxu0 0.0
  %832 = vmatprep.subr.mxu0 0.0
  %833 = vmatpush2.msra.mxu0 0.0
  %834 = vmatprep.subr.mxu0 0.0
  %835 = vmatpush2.msra.mxu0 0.0
  %836 = vmatprep.subr.mxu0 0.0
  %837 = vmatpush2.msra.mxu0 0.0
  %838 = vmatprep.subr.mxu0 0.0
  %839 = vmatpush2.msra.mxu0 0.0
  %840 = vmatprep.subr.mxu0 0.0
  %841 = vmatpush2.msra.mxu0 0.0
  %842 = vmatprep.subr.mxu0 0.0
  %843 = vmatpush2.msra.mxu0 0.0
  %844 = vmatprep.subr.mxu0 0.0
  %845 = vmatpush2.msra.mxu0 0.0
  %846 = vmatprep.subr.mxu0 0.0
  %847 = vmatpush2.msra.mxu0 0.0
  %848 = vmatprep.subr.mxu0 0.0
  %849 = vmatpush2.msra.mxu0 0.0
  %850 = vmatprep.subr.mxu0 0.0
  %851 = vmatpush2.msra.mxu0 0.0
  %852 = vmatprep.subr.mxu0 0.0
  %853 = vmatpush2.msra.mxu0 0.0
  %854 = vmatprep.subr.mxu0 0.0
  %855 = vmatpush2.msra.mxu0 0.0
  %856 = vmatprep.subr.mxu0 0.0
  %857 = vmatpush2.msra.mxu0 0.0
  %858 = vmatprep.subr.mxu0 0.0
  %859 = vmatpush2.msra.mxu0 0.0
  %860 = vmatprep.mubr.f32.mxu0 0.0
  %861 = vmatmul.mubr.f32.gmra.mxu0 %v794
  %v862 = vpop.f32.mrf.mxu0
  %v863 = vadd.f32 0.0, %v862
  %v864 = vpop.f32.mrf.mxu0
  %v865 = vadd.f32 0.0, %v864
  %866 = vdwg.mxu0
  %867 = vmatprep.subr.mxu0 0.0
  %868 = vmatpush1.msra.mxu0 %v269
  %869 = vmatprep.subr.mxu0 0.0
  %870 = vmatpush1.msra.mxu0 %v266
  %871 = vmatprep.subr.mxu0 0.0
  %872 = vmatpush1.msra.mxu0 %v263
  %873 = vmatprep.subr.mxu0 0.0
  %874 = vmatpush1.msra.mxu0 %v260
  %875 = vmatprep.subr.mxu0 0.0
  %876 = vmatpush1.msra.mxu0 %v257
  %877 = vmatprep.subr.mxu0 0.0
  %878 = vmatpush1.msra.mxu0 %v254
  %879 = vmatprep.subr.mxu0 0.0
  %880 = vmatpush1.msra.mxu0 %v251
  %881 = vmatprep.subr.mxu0 0.0
  %882 = vmatpush1.msra.mxu0 %v248
  %883 = vmatprep.subr.mxu0 0.0
  %884 = vmatpush1.msra.mxu0 %v245
  %885 = vmatprep.subr.mxu0 0.0
  %886 = vmatpush1.msra.mxu0 %v242
  %887 = vmatprep.subr.mxu0 0.0
  %888 = vmatpush1.msra.mxu0 %v239
  %889 = vmatprep.subr.mxu0 0.0
  %890 = vmatpush1.msra.mxu0 %v236
  %891 = vmatprep.subr.mxu0 0.0
  %892 = vmatpush1.msra.mxu0 %v233
  %893 = vmatprep.subr.mxu0 0.0
  %894 = vmatpush1.msra.mxu0 %v230
  %895 = vmatprep.subr.mxu0 0.0
  %896 = vmatpush1.msra.mxu0 %v227
  %897 = vmatprep.subr.mxu0 0.0
  %898 = vmatpush1.msra.mxu0 %v224
  %899 = vmatprep.subr.mxu0 0.0
  %900 = vmatpush2.msra.mxu0 0.0
  %901 = vmatprep.subr.mxu0 0.0
  %902 = vmatpush2.msra.mxu0 0.0
  %903 = vmatprep.subr.mxu0 0.0
  %904 = vmatpush2.msra.mxu0 0.0
  %905 = vmatprep.subr.mxu0 0.0
  %906 = vmatpush2.msra.mxu0 0.0
  %907 = vmatprep.subr.mxu0 0.0
  %908 = vmatpush2.msra.mxu0 0.0
  %909 = vmatprep.subr.mxu0 0.0
  %910 = vmatpush2.msra.mxu0 0.0
  %911 = vmatprep.subr.mxu0 0.0
  %912 = vmatpush2.msra.mxu0 0.0
  %913 = vmatprep.subr.mxu0 0.0
  %914 = vmatpush2.msra.mxu0 0.0
  %915 = vmatprep.subr.mxu0 0.0
  %916 = vmatpush2.msra.mxu0 0.0
  %917 = vmatprep.subr.mxu0 0.0
  %918 = vmatpush2.msra.mxu0 0.0
  %919 = vmatprep.subr.mxu0 0.0
  %920 = vmatpush2.msra.mxu0 0.0
  %921 = vmatprep.subr.mxu0 0.0
  %922 = vmatpush2.msra.mxu0 0.0
  %923 = vmatprep.subr.mxu0 0.0
  %924 = vmatpush2.msra.mxu0 0.0
  %925 = vmatprep.subr.mxu0 0.0
  %926 = vmatpush2.msra.mxu0 0.0
  %927 = vmatprep.subr.mxu0 0.0
  %928 = vmatpush2.msra.mxu0 0.0
  %929 = vmatprep.subr.mxu0 0.0
  %930 = vmatpush2.msra.mxu0 0.0
  %931 = vmatprep.mubr.f32.mxu0 0.0
  %932 = vmatmul.mubr.f32.gmra.mxu0 %v794
  %v933 = vpop.f32.mrf.mxu0
  %v934 = vadd.f32 0.0, %v933
  %v935 = vpop.f32.mrf.mxu0
  %936 = vdwg.mxu0
  %v938 = vrot.slane %v863, 2
  %v940 = vadd.f32 %v137, %v938
  %v941 = vxor.u32 %v940, 2147483648
  %v942 = vmul.f32 %v941, 1.442695
  %v943 = vpow.pop %v942
  %v944 = vadd.f32 %v943, 1.0
  %v945 = vrcp.pop %v944
  %v946 = vmul.f32 1.0, %v945
  %v948 = vrot.slane %v865, 2
  %v950 = vadd.f32 %v139, %v948
  %v951 = vxor.u32 %v950, 2147483648
  %v952 = vmul.f32 %v951, 1.442695
  %v953 = vpow.pop %v952
  %v954 = vadd.f32 %v953, 1.0
  %v955 = vrcp.pop %v954
  %v956 = vmul.f32 1.0, %v955
  %v957 = vadd.f32 %v934, %v275
  %v959 = vrot.slane %v957, 2
  %v961 = vmul.f32 %v946, %v959
  %v962 = vadd.f32 %v214, %v961
  %v963 = vtanh.pop %v962
  %v964 = vsub.f32 1.0, %v956
  %v965 = vmul.f32 %v964, %v963
  %v966 = vrot.slane %v792, 6
  %v968 = vmul.f32 %v956, %v966
  %v969 = vadd.f32 %v965, %v968
  %v971 = vrot.slane %v969, 6
  %973 = vmatprep.subr.mxu0 %v268
  %974 = vmatpush1.msra.mxu0 %v267
  %975 = vmatprep.subr.mxu0 %v265
  %976 = vmatpush1.msra.mxu0 %v264
  %977 = vmatprep.subr.mxu0 %v262
  %978 = vmatpush1.msra.mxu0 %v261
  %979 = vmatprep.subr.mxu0 %v259
  %980 = vmatpush1.msra.mxu0 %v258
  %981 = vmatprep.subr.mxu0 %v256
  %982 = vmatpush1.msra.mxu0 %v255
  %983 = vmatprep.subr.mxu0 %v253
  %984 = vmatpush1.msra.mxu0 %v252
  %985 = vmatprep.subr.mxu0 %v250
  %986 = vmatpush1.msra.mxu0 %v249
  %987 = vmatprep.subr.mxu0 %v247
  %988 = vmatpush1.msra.mxu0 %v246
  %989 = vmatprep.subr.mxu0 %v244
  %990 = vmatpush1.msra.mxu0 %v243
  %991 = vmatprep.subr.mxu0 %v241
  %992 = vmatpush1.msra.mxu0 %v240
  %993 = vmatprep.subr.mxu0 %v238
  %994 = vmatpush1.msra.mxu0 %v237
  %995 = vmatprep.subr.mxu0 %v235
  %996 = vmatpush1.msra.mxu0 %v234
  %997 = vmatprep.subr.mxu0 %v232
  %998 = vmatpush1.msra.mxu0 %v231
  %999 = vmatprep.subr.mxu0 %v229
  %1000 = vmatpush1.msra.mxu0 %v228
  %1001 = vmatprep.subr.mxu0 %v226
  %1002 = vmatpush1.msra.mxu0 %v225
  %1003 = vmatprep.subr.mxu0 %v223
  %1004 = vmatpush1.msra.mxu0 %v222
  %1005 = vmatprep.subr.mxu0 0.0
  %1006 = vmatpush2.msra.mxu0 0.0
  %1007 = vmatprep.subr.mxu0 0.0
  %1008 = vmatpush2.msra.mxu0 0.0
  %1009 = vmatprep.subr.mxu0 0.0
  %1010 = vmatpush2.msra.mxu0 0.0
  %1011 = vmatprep.subr.mxu0 0.0
  %1012 = vmatpush2.msra.mxu0 0.0
  %1013 = vmatprep.subr.mxu0 0.0
  %1014 = vmatpush2.msra.mxu0 0.0
  %1015 = vmatprep.subr.mxu0 0.0
  %1016 = vmatpush2.msra.mxu0 0.0
  %1017 = vmatprep.subr.mxu0 0.0
  %1018 = vmatpush2.msra.mxu0 0.0
  %1019 = vmatprep.subr.mxu0 0.0
  %1020 = vmatpush2.msra.mxu0 0.0
  %1021 = vmatprep.subr.mxu0 0.0
  %1022 = vmatpush2.msra.mxu0 0.0
  %1023 = vmatprep.subr.mxu0 0.0
  %1024 = vmatpush2.msra.mxu0 0.0
  %1025 = vmatprep.subr.mxu0 0.0
  %1026 = vmatpush2.msra.mxu0 0.0
  %1027 = vmatprep.subr.mxu0 0.0
  %1028 = vmatpush2.msra.mxu0 0.0
  %1029 = vmatprep.subr.mxu0 0.0
  %1030 = vmatpush2.msra.mxu0 0.0
  %1031 = vmatprep.subr.mxu0 0.0
  %1032 = vmatpush2.msra.mxu0 0.0
  %1033 = vmatprep.subr.mxu0 0.0
  %1034 = vmatpush2.msra.mxu0 0.0
  %1035 = vmatprep.subr.mxu0 0.0
  %1036 = vmatpush2.msra.mxu0 0.0
  %1037 = vmatprep.mubr.f32.mxu0 0.0
  %1038 = vmatmul.mubr.f32.gmra.mxu0 %v971
  %v1039 = vpop.f32.mrf.mxu0
  %v1040 = vadd.f32 0.0, %v1039
  %v1041 = vpop.f32.mrf.mxu0
  %v1042 = vadd.f32 0.0, %v1041
  %1043 = vdwg.mxu0
  %1044 = vmatprep.subr.mxu0 0.0
  %1045 = vmatpush1.msra.mxu0 %v269
  %1046 = vmatprep.subr.mxu0 0.0
  %1047 = vmatpush1.msra.mxu0 %v266
  %1048 = vmatprep.subr.mxu0 0.0
  %1049 = vmatpush1.msra.mxu0 %v263
  %1050 = vmatprep.subr.mxu0 0.0
  %1051 = vmatpush1.msra.mxu0 %v260
  %1052 = vmatprep.subr.mxu0 0.0
  %1053 = vmatpush1.msra.mxu0 %v257
  %1054 = vmatprep.subr.mxu0 0.0
  %1055 = vmatpush1.msra.mxu0 %v254
  %1056 = vmatprep.subr.mxu0 0.0
  %1057 = vmatpush1.msra.mxu0 %v251
  %1058 = vmatprep.subr.mxu0 0.0
  %1059 = vmatpush1.msra.mxu0 %v248
  %1060 = vmatprep.subr.mxu0 0.0
  %1061 = vmatpush1.msra.mxu0 %v245
  %1062 = vmatprep.subr.mxu0 0.0
  %1063 = vmatpush1.msra.mxu0 %v242
  %1064 = vmatprep.subr.mxu0 0.0
  %1065 = vmatpush1.msra.mxu0 %v239
  %1066 = vmatprep.subr.mxu0 0.0
  %1067 = vmatpush1.msra.mxu0 %v236
  %1068 = vmatprep.subr.mxu0 0.0
  %1069 = vmatpush1.msra.mxu0 %v233
  %1070 = vmatprep.subr.mxu0 0.0
  %1071 = vmatpush1.msra.mxu0 %v230
  %1072 = vmatprep.subr.mxu0 0.0
  %1073 = vmatpush1.msra.mxu0 %v227
  %1074 = vmatprep.subr.mxu0 0.0
  %1075 = vmatpush1.msra.mxu0 %v224
  %1076 = vmatprep.subr.mxu0 0.0
  %1077 = vmatpush2.msra.mxu0 0.0
  %1078 = vmatprep.subr.mxu0 0.0
  %1079 = vmatpush2.msra.mxu0 0.0
  %1080 = vmatprep.subr.mxu0 0.0
  %1081 = vmatpush2.msra.mxu0 0.0
  %1082 = vmatprep.subr.mxu0 0.0
  %1083 = vmatpush2.msra.mxu0 0.0
  %1084 = vmatprep.subr.mxu0 0.0
  %1085 = vmatpush2.msra.mxu0 0.0
  %1086 = vmatprep.subr.mxu0 0.0
  %1087 = vmatpush2.msra.mxu0 0.0
  %1088 = vmatprep.subr.mxu0 0.0
  %1089 = vmatpush2.msra.mxu0 0.0
  %1090 = vmatprep.subr.mxu0 0.0
  %1091 = vmatpush2.msra.mxu0 0.0
  %1092 = vmatprep.subr.mxu0 0.0
  %1093 = vmatpush2.msra.mxu0 0.0
  %1094 = vmatprep.subr.mxu0 0.0
  %1095 = vmatpush2.msra.mxu0 0.0
  %1096 = vmatprep.subr.mxu0 0.0
  %1097 = vmatpush2.msra.mxu0 0.0
  %1098 = vmatprep.subr.mxu0 0.0
  %1099 = vmatpush2.msra.mxu0 0.0
  %1100 = vmatprep.subr.mxu0 0.0
  %1101 = vmatpush2.msra.mxu0 0.0
  %1102 = vmatprep.subr.mxu0 0.0
  %1103 = vmatpush2.msra.mxu0 0.0
  %1104 = vmatprep.subr.mxu0 0.0
  %1105 = vmatpush2.msra.mxu0 0.0
  %1106 = vmatprep.subr.mxu0 0.0
  %1107 = vmatpush2.msra.mxu0 0.0
  %1108 = vmatprep.mubr.f32.mxu0 0.0
  %1109 = vmatmul.mubr.f32.gmra.mxu0 %v971
  %v1110 = vpop.f32.mrf.mxu0
  %v1111 = vadd.f32 0.0, %v1110
  %v1112 = vpop.f32.mrf.mxu0
  %1113 = vdwg.mxu0
  %v1114 = vadd.f32 %v143, %v1040
  %v1115 = vxor.u32 %v1114, 2147483648
  %v1116 = vmul.f32 %v1115, 1.442695
  %v1117 = vpow.pop %v1116
  %v1118 = vadd.f32 %v1117, 1.0
  %v1119 = vrcp.pop %v1118
  %v1120 = vmul.f32 1.0, %v1119
  %v1121 = vadd.f32 %v145, %v1042
  %v1122 = vxor.u32 %v1121, 2147483648
  %v1123 = vmul.f32 %v1122, 1.442695
  %v1124 = vpow.pop %v1123
  %v1125 = vadd.f32 %v1124, 1.0
  %v1126 = vrcp.pop %v1125
  %v1127 = vmul.f32 1.0, %v1126
  %v1128 = vadd.f32 %v1111, %v275
  %v1129 = vmul.f32 %v1120, %v1128
  %v1130 = vadd.f32 %v219, %v1129
  %v1131 = vtanh.pop %v1130
  %v1132 = vsub.f32 1.0, %v1127
  %v1133 = vmul.f32 %v1132, %v1131
  %v1134 = vmul.f32 %v1127, %v971
  %v1135 = vadd.f32 %v1133, %v1134
  %1136 = vmatprep.subr.mxu0 %v268
  %1137 = vmatpush1.msra.mxu0 %v267
  %1138 = vmatprep.subr.mxu0 %v265
  %1139 = vmatpush1.msra.mxu0 %v264
  %1140 = vmatprep.subr.mxu0 %v262
  %1141 = vmatpush1.msra.mxu0 %v261
  %1142 = vmatprep.subr.mxu0 %v259
  %1143 = vmatpush1.msra.mxu0 %v258
  %1144 = vmatprep.subr.mxu0 %v256
  %1145 = vmatpush1.msra.mxu0 %v255
  %1146 = vmatprep.subr.mxu0 %v253
  %1147 = vmatpush1.msra.mxu0 %v252
  %1148 = vmatprep.subr.mxu0 %v250
  %1149 = vmatpush1.msra.mxu0 %v249
  %1150 = vmatprep.subr.mxu0 %v247
  %1151 = vmatpush1.msra.mxu0 %v246
  %1152 = vmatprep.subr.mxu0 %v244
  %1153 = vmatpush1.msra.mxu0 %v243
  %1154 = vmatprep.subr.mxu0 %v241
  %1155 = vmatpush1.msra.mxu0 %v240
  %1156 = vmatprep.subr.mxu0 %v238
  %1157 = vmatpush1.msra.mxu0 %v237
  %1158 = vmatprep.subr.mxu0 %v235
  %1159 = vmatpush1.msra.mxu0 %v234
  %1160 = vmatprep.subr.mxu0 %v232
  %1161 = vmatpush1.msra.mxu0 %v231
  %1162 = vmatprep.subr.mxu0 %v229
  %1163 = vmatpush1.msra.mxu0 %v228
  %1164 = vmatprep.subr.mxu0 %v226
  %1165 = vmatpush1.msra.mxu0 %v225
  %1166 = vmatprep.subr.mxu0 %v223
  %1167 = vmatpush1.msra.mxu0 %v222
  %1168 = vmatprep.subr.mxu0 0.0
  %1169 = vmatpush2.msra.mxu0 0.0
  %1170 = vmatprep.subr.mxu0 0.0
  %1171 = vmatpush2.msra.mxu0 0.0
  %1172 = vmatprep.subr.mxu0 0.0
  %1173 = vmatpush2.msra.mxu0 0.0
  %1174 = vmatprep.subr.mxu0 0.0
  %1175 = vmatpush2.msra.mxu0 0.0
  %1176 = vmatprep.subr.mxu0 0.0
  %1177 = vmatpush2.msra.mxu0 0.0
  %1178 = vmatprep.subr.mxu0 0.0
  %1179 = vmatpush2.msra.mxu0 0.0
  %1180 = vmatprep.subr.mxu0 0.0
  %1181 = vmatpush2.msra.mxu0 0.0
  %1182 = vmatprep.subr.mxu0 0.0
  %1183 = vmatpush2.msra.mxu0 0.0
  %1184 = vmatprep.subr.mxu0 0.0
  %1185 = vmatpush2.msra.mxu0 0.0
  %1186 = vmatprep.subr.mxu0 0.0
  %1187 = vmatpush2.msra.mxu0 0.0
  %1188 = vmatprep.subr.mxu0 0.0
  %1189 = vmatpush2.msra.mxu0 0.0
  %1190 = vmatprep.subr.mxu0 0.0
  %1191 = vmatpush2.msra.mxu0 0.0
  %1192 = vmatprep.subr.mxu0 0.0
  %1193 = vmatpush2.msra.mxu0 0.0
  %1194 = vmatprep.subr.mxu0 0.0
  %1195 = vmatpush2.msra.mxu0 0.0
  %1196 = vmatprep.subr.mxu0 0.0
  %1197 = vmatpush2.msra.mxu0 0.0
  %1198 = vmatprep.subr.mxu0 0.0
  %1199 = vmatpush2.msra.mxu0 0.0
  %1200 = vmatprep.mubr.f32.mxu0 0.0
  %1201 = vmatmul.mubr.f32.gmra.mxu0 %v1135
  %v1202 = vpop.f32.mrf.mxu0
  %v1203 = vadd.f32 0.0, %v1202
  %v1204 = vpop.f32.mrf.mxu0
  %v1205 = vadd.f32 0.0, %v1204
  %1206 = vdwg.mxu0
  %1207 = vmatprep.subr.mxu0 0.0
  %1208 = vmatpush1.msra.mxu0 %v269
  %1209 = vmatprep.subr.mxu0 0.0
  %1210 = vmatpush1.msra.mxu0 %v266
  %1211 = vmatprep.subr.mxu0 0.0
  %1212 = vmatpush1.msra.mxu0 %v263
  %1213 = vmatprep.subr.mxu0 0.0
  %1214 = vmatpush1.msra.mxu0 %v260
  %1215 = vmatprep.subr.mxu0 0.0
  %1216 = vmatpush1.msra.mxu0 %v257
  %1217 = vmatprep.subr.mxu0 0.0
  %1218 = vmatpush1.msra.mxu0 %v254
  %1219 = vmatprep.subr.mxu0 0.0
  %1220 = vmatpush1.msra.mxu0 %v251
  %1221 = vmatprep.subr.mxu0 0.0
  %1222 = vmatpush1.msra.mxu0 %v248
  %1223 = vmatprep.subr.mxu0 0.0
  %1224 = vmatpush1.msra.mxu0 %v245
  %1225 = vmatprep.subr.mxu0 0.0
  %1226 = vmatpush1.msra.mxu0 %v242
  %1227 = vmatprep.subr.mxu0 0.0
  %1228 = vmatpush1.msra.mxu0 %v239
  %1229 = vmatprep.subr.mxu0 0.0
  %1230 = vmatpush1.msra.mxu0 %v236
  %1231 = vmatprep.subr.mxu0 0.0
  %1232 = vmatpush1.msra.mxu0 %v233
  %1233 = vmatprep.subr.mxu0 0.0
  %1234 = vmatpush1.msra.mxu0 %v230
  %1235 = vmatprep.subr.mxu0 0.0
  %1236 = vmatpush1.msra.mxu0 %v227
  %1237 = vmatprep.subr.mxu0 0.0
  %1238 = vmatpush1.msra.mxu0 %v224
  %1239 = vmatprep.subr.mxu0 0.0
  %1240 = vmatpush2.msra.mxu0 0.0
  %1241 = vmatprep.subr.mxu0 0.0
  %1242 = vmatpush2.msra.mxu0 0.0
  %1243 = vmatprep.subr.mxu0 0.0
  %1244 = vmatpush2.msra.mxu0 0.0
  %1245 = vmatprep.subr.mxu0 0.0
  %1246 = vmatpush2.msra.mxu0 0.0
  %1247 = vmatprep.subr.mxu0 0.0
  %1248 = vmatpush2.msra.mxu0 0.0
  %1249 = vmatprep.subr.mxu0 0.0
  %1250 = vmatpush2.msra.mxu0 0.0
  %1251 = vmatprep.subr.mxu0 0.0
  %1252 = vmatpush2.msra.mxu0 0.0
  %1253 = vmatprep.subr.mxu0 0.0
  %1254 = vmatpush2.msra.mxu0 0.0
  %1255 = vmatprep.subr.mxu0 0.0
  %1256 = vmatpush2.msra.mxu0 0.0
  %1257 = vmatprep.subr.mxu0 0.0
  %1258 = vmatpush2.msra.mxu0 0.0
  %1259 = vmatprep.subr.mxu0 0.0
  %1260 = vmatpush2.msra.mxu0 0.0
  %1261 = vmatprep.subr.mxu0 0.0
  %1262 = vmatpush2.msra.mxu0 0.0
  %1263 = vmatprep.subr.mxu0 0.0
  %1264 = vmatpush2.msra.mxu0 0.0
  %1265 = vmatprep.subr.mxu0 0.0
  %1266 = vmatpush2.msra.mxu0 0.0
  %1267 = vmatprep.subr.mxu0 0.0
  %1268 = vmatpush2.msra.mxu0 0.0
  %1269 = vmatprep.subr.mxu0 0.0
  %1270 = vmatpush2.msra.mxu0 0.0
  %1271 = vmatprep.mubr.f32.mxu0 0.0
  %1272 = vmatmul.mubr.f32.gmra.mxu0 %v1135
  %v1273 = vpop.f32.mrf.mxu0
  %v1274 = vadd.f32 0.0, %v1273
  %v1275 = vpop.f32.mrf.mxu0
  %1276 = vdwg.mxu0
  %v1278 = vrot.slane %v1203, 6
  %v1280 = vadd.f32 %v143, %v1278
  %v1281 = vxor.u32 %v1280, 2147483648
  %v1282 = vmul.f32 %v1281, 1.442695
  %v1283 = vpow.pop %v1282
  %v1284 = vadd.f32 %v1283, 1.0
  %v1285 = vrcp.pop %v1284
  %v1286 = vmul.f32 1.0, %v1285
  %v1288 = vrot.slane %v1205, 6
  %v1290 = vadd.f32 %v145, %v1288
  %v1291 = vxor.u32 %v1290, 2147483648
  %v1292 = vmul.f32 %v1291, 1.442695
  %v1293 = vpow.pop %v1292
  %v1294 = vadd.f32 %v1293, 1.0
  %v1295 = vrcp.pop %v1294
  %v1296 = vmul.f32 1.0, %v1295
  %v1297 = vadd.f32 %v1274, %v275
  %v1299 = vrot.slane %v1297, 6
  %v1301 = vmul.f32 %v1286, %v1299
  %v1302 = vadd.f32 %v219, %v1301
  %v1303 = vtanh.pop %v1302
  %v1304 = vsub.f32 1.0, %v1296
  %v1305 = vmul.f32 %v1304, %v1303
  %v1307 = vrot.slane %v1135, 6
  %v1309 = vmul.f32 %v1296, %v1307
  %v1310 = vadd.f32 %v1305, %v1309
  %v1312 = vrot.slane %v1310, 2
  %1314 = vmatprep.subr.mxu0 %v268
  %1315 = vmatpush1.msra.mxu0 %v267
  %1316 = vmatprep.subr.mxu0 %v265
  %1317 = vmatpush1.msra.mxu0 %v264
  %1318 = vmatprep.subr.mxu0 %v262
  %1319 = vmatpush1.msra.mxu0 %v261
  %1320 = vmatprep.subr.mxu0 %v259
  %1321 = vmatpush1.msra.mxu0 %v258
  %1322 = vmatprep.subr.mxu0 %v256
  %1323 = vmatpush1.msra.mxu0 %v255
  %1324 = vmatprep.subr.mxu0 %v253
  %1325 = vmatpush1.msra.mxu0 %v252
  %1326 = vmatprep.subr.mxu0 %v250
  %1327 = vmatpush1.msra.mxu0 %v249
  %1328 = vmatprep.subr.mxu0 %v247
  %1329 = vmatpush1.msra.mxu0 %v246
  %1330 = vmatprep.subr.mxu0 %v244
  %1331 = vmatpush1.msra.mxu0 %v243
  %1332 = vmatprep.subr.mxu0 %v241
  %1333 = vmatpush1.msra.mxu0 %v240
  %1334 = vmatprep.subr.mxu0 %v238
  %1335 = vmatpush1.msra.mxu0 %v237
  %1336 = vmatprep.subr.mxu0 %v235
  %1337 = vmatpush1.msra.mxu0 %v234
  %1338 = vmatprep.subr.mxu0 %v232
  %1339 = vmatpush1.msra.mxu0 %v231
  %1340 = vmatprep.subr.mxu0 %v229
  %1341 = vmatpush1.msra.mxu0 %v228
  %1342 = vmatprep.subr.mxu0 %v226
  %1343 = vmatpush1.msra.mxu0 %v225
  %1344 = vmatprep.subr.mxu0 %v223
  %1345 = vmatpush1.msra.mxu0 %v222
  %1346 = vmatprep.subr.mxu0 0.0
  %1347 = vmatpush2.msra.mxu0 0.0
  %1348 = vmatprep.subr.mxu0 0.0
  %1349 = vmatpush2.msra.mxu0 0.0
  %1350 = vmatprep.subr.mxu0 0.0
  %1351 = vmatpush2.msra.mxu0 0.0
  %1352 = vmatprep.subr.mxu0 0.0
  %1353 = vmatpush2.msra.mxu0 0.0
  %1354 = vmatprep.subr.mxu0 0.0
  %1355 = vmatpush2.msra.mxu0 0.0
  %1356 = vmatprep.subr.mxu0 0.0
  %1357 = vmatpush2.msra.mxu0 0.0
  %1358 = vmatprep.subr.mxu0 0.0
  %1359 = vmatpush2.msra.mxu0 0.0
  %1360 = vmatprep.subr.mxu0 0.0
  %1361 = vmatpush2.msra.mxu0 0.0
  %1362 = vmatprep.subr.mxu0 0.0
  %1363 = vmatpush2.msra.mxu0 0.0
  %1364 = vmatprep.subr.mxu0 0.0
  %1365 = vmatpush2.msra.mxu0 0.0
  %1366 = vmatprep.subr.mxu0 0.0
  %1367 = vmatpush2.msra.mxu0 0.0
  %1368 = vmatprep.subr.mxu0 0.0
  %1369 = vmatpush2.msra.mxu0 0.0
  %1370 = vmatprep.subr.mxu0 0.0
  %1371 = vmatpush2.msra.mxu0 0.0
  %1372 = vmatprep.subr.mxu0 0.0
  %1373 = vmatpush2.msra.mxu0 0.0
  %1374 = vmatprep.subr.mxu0 0.0
  %1375 = vmatpush2.msra.mxu0 0.0
  %1376 = vmatprep.subr.mxu0 0.0
  %1377 = vmatpush2.msra.mxu0 0.0
  %1378 = vmatprep.mubr.f32.mxu0 0.0
  %1379 = vmatmul.mubr.f32.gmra.mxu0 %v1312
  %v1380 = vpop.f32.mrf.mxu0
  %v1381 = vadd.f32 0.0, %v1380
  %v1382 = vpop.f32.mrf.mxu0
  %v1383 = vadd.f32 0.0, %v1382
  %1384 = vdwg.mxu0
  %1385 = vmatprep.subr.mxu0 0.0
  %1386 = vmatpush1.msra.mxu0 %v269
  %1387 = vmatprep.subr.mxu0 0.0
  %1388 = vmatpush1.msra.mxu0 %v266
  %1389 = vmatprep.subr.mxu0 0.0
  %1390 = vmatpush1.msra.mxu0 %v263
  %1391 = vmatprep.subr.mxu0 0.0
  %1392 = vmatpush1.msra.mxu0 %v260
  %1393 = vmatprep.subr.mxu0 0.0
  %1394 = vmatpush1.msra.mxu0 %v257
  %1395 = vmatprep.subr.mxu0 0.0
  %1396 = vmatpush1.msra.mxu0 %v254
  %1397 = vmatprep.subr.mxu0 0.0
  %1398 = vmatpush1.msra.mxu0 %v251
  %1399 = vmatprep.subr.mxu0 0.0
  %1400 = vmatpush1.msra.mxu0 %v248
  %1401 = vmatprep.subr.mxu0 0.0
  %1402 = vmatpush1.msra.mxu0 %v245
  %1403 = vmatprep.subr.mxu0 0.0
  %1404 = vmatpush1.msra.mxu0 %v242
  %1405 = vmatprep.subr.mxu0 0.0
  %1406 = vmatpush1.msra.mxu0 %v239
  %1407 = vmatprep.subr.mxu0 0.0
  %1408 = vmatpush1.msra.mxu0 %v236
  %1409 = vmatprep.subr.mxu0 0.0
  %1410 = vmatpush1.msra.mxu0 %v233
  %1411 = vmatprep.subr.mxu0 0.0
  %1412 = vmatpush1.msra.mxu0 %v230
  %1413 = vmatprep.subr.mxu0 0.0
  %1414 = vmatpush1.msra.mxu0 %v227
  %1415 = vmatprep.subr.mxu0 0.0
  %1416 = vmatpush1.msra.mxu0 %v224
  %1417 = vmatprep.subr.mxu0 0.0
  %1418 = vmatpush2.msra.mxu0 0.0
  %1419 = vmatprep.subr.mxu0 0.0
  %1420 = vmatpush2.msra.mxu0 0.0
  %1421 = vmatprep.subr.mxu0 0.0
  %1422 = vmatpush2.msra.mxu0 0.0
  %1423 = vmatprep.subr.mxu0 0.0
  %1424 = vmatpush2.msra.mxu0 0.0
  %1425 = vmatprep.subr.mxu0 0.0
  %1426 = vmatpush2.msra.mxu0 0.0
  %1427 = vmatprep.subr.mxu0 0.0
  %1428 = vmatpush2.msra.mxu0 0.0
  %1429 = vmatprep.subr.mxu0 0.0
  %1430 = vmatpush2.msra.mxu0 0.0
  %1431 = vmatprep.subr.mxu0 0.0
  %1432 = vmatpush2.msra.mxu0 0.0
  %1433 = vmatprep.subr.mxu0 0.0
  %1434 = vmatpush2.msra.mxu0 0.0
  %1435 = vmatprep.subr.mxu0 0.0
  %1436 = vmatpush2.msra.mxu0 0.0
  %1437 = vmatprep.subr.mxu0 0.0
  %1438 = vmatpush2.msra.mxu0 0.0
  %1439 = vmatprep.subr.mxu0 0.0
  %1440 = vmatpush2.msra.mxu0 0.0
  %1441 = vmatprep.subr.mxu0 0.0
  %1442 = vmatpush2.msra.mxu0 0.0
  %1443 = vmatprep.subr.mxu0 0.0
  %1444 = vmatpush2.msra.mxu0 0.0
  %1445 = vmatprep.subr.mxu0 0.0
  %1446 = vmatpush2.msra.mxu0 0.0
  %1447 = vmatprep.subr.mxu0 0.0
  %1448 = vmatpush2.msra.mxu0 0.0
  %1449 = vmatprep.mubr.f32.mxu0 0.0
  %1450 = vmatmul.mubr.f32.gmra.mxu0 %v1312
  %v1451 = vpop.f32.mrf.mxu0
  %v1452 = vadd.f32 0.0, %v1451
  %v1453 = vpop.f32.mrf.mxu0
  %1454 = vdwg.mxu0
  %v1456 = vrot.slane %v1381, 4
  %v1458 = vadd.f32 %v143, %v1456
  %v1459 = vxor.u32 %v1458, 2147483648
  %v1460 = vmul.f32 %v1459, 1.442695
  %v1461 = vpow.pop %v1460
  %v1462 = vadd.f32 %v1461, 1.0
  %v1463 = vrcp.pop %v1462
  %v1464 = vmul.f32 1.0, %v1463
  %v1466 = vrot.slane %v1383, 4
  %v1468 = vadd.f32 %v145, %v1466
  %v1469 = vxor.u32 %v1468, 2147483648
  %v1470 = vmul.f32 %v1469, 1.442695
  %v1471 = vpow.pop %v1470
  %v1472 = vadd.f32 %v1471, 1.0
  %v1473 = vrcp.pop %v1472
  %v1474 = vmul.f32 1.0, %v1473
  %v1475 = vadd.f32 %v1452, %v275
  %v1477 = vrot.slane %v1475, 4
  %v1479 = vmul.f32 %v1464, %v1477
  %v1480 = vadd.f32 %v219, %v1479
  %v1481 = vtanh.pop %v1480
  %v1482 = vsub.f32 1.0, %v1474
  %v1483 = vmul.f32 %v1482, %v1481
  %v1484 = vrot.slane %v1310, 6
  %v1486 = vmul.f32 %v1474, %v1484
  %v1487 = vadd.f32 %v1483, %v1486
  %v1489 = vrot.slane %v1487, 4
  %1491 = vmatprep.subr.mxu0 %v268
  %1492 = vmatpush1.msra.mxu0 %v267
  %1493 = vmatprep.subr.mxu0 %v265
  %1494 = vmatpush1.msra.mxu0 %v264
  %1495 = vmatprep.subr.mxu0 %v262
  %1496 = vmatpush1.msra.mxu0 %v261
  %1497 = vmatprep.subr.mxu0 %v259
  %1498 = vmatpush1.msra.mxu0 %v258
  %1499 = vmatprep.subr.mxu0 %v256
  %1500 = vmatpush1.msra.mxu0 %v255
  %1501 = vmatprep.subr.mxu0 %v253
  %1502 = vmatpush1.msra.mxu0 %v252
  %1503 = vmatprep.subr.mxu0 %v250
  %1504 = vmatpush1.msra.mxu0 %v249
  %1505 = vmatprep.subr.mxu0 %v247
  %1506 = vmatpush1.msra.mxu0 %v246
  %1507 = vmatprep.subr.mxu0 %v244
  %1508 = vmatpush1.msra.mxu0 %v243
  %1509 = vmatprep.subr.mxu0 %v241
  %1510 = vmatpush1.msra.mxu0 %v240
  %1511 = vmatprep.subr.mxu0 %v238
  %1512 = vmatpush1.msra.mxu0 %v237
  %1513 = vmatprep.subr.mxu0 %v235
  %1514 = vmatpush1.msra.mxu0 %v234
  %1515 = vmatprep.subr.mxu0 %v232
  %1516 = vmatpush1.msra.mxu0 %v231
  %1517 = vmatprep.subr.mxu0 %v229
  %1518 = vmatpush1.msra.mxu0 %v228
  %1519 = vmatprep.subr.mxu0 %v226
  %1520 = vmatpush1.msra.mxu0 %v225
  %1521 = vmatprep.subr.mxu0 %v223
  %1522 = vmatpush1.msra.mxu0 %v222
  %1523 = vmatprep.subr.mxu0 0.0
  %1524 = vmatpush2.msra.mxu0 0.0
  %1525 = vmatprep.subr.mxu0 0.0
  %1526 = vmatpush2.msra.mxu0 0.0
  %1527 = vmatprep.subr.mxu0 0.0
  %1528 = vmatpush2.msra.mxu0 0.0
  %1529 = vmatprep.subr.mxu0 0.0
  %1530 = vmatpush2.msra.mxu0 0.0
  %1531 = vmatprep.subr.mxu0 0.0
  %1532 = vmatpush2.msra.mxu0 0.0
  %1533 = vmatprep.subr.mxu0 0.0
  %1534 = vmatpush2.msra.mxu0 0.0
  %1535 = vmatprep.subr.mxu0 0.0
  %1536 = vmatpush2.msra.mxu0 0.0
  %1537 = vmatprep.subr.mxu0 0.0
  %1538 = vmatpush2.msra.mxu0 0.0
  %1539 = vmatprep.subr.mxu0 0.0
  %1540 = vmatpush2.msra.mxu0 0.0
  %1541 = vmatprep.subr.mxu0 0.0
  %1542 = vmatpush2.msra.mxu0 0.0
  %1543 = vmatprep.subr.mxu0 0.0
  %1544 = vmatpush2.msra.mxu0 0.0
  %1545 = vmatprep.subr.mxu0 0.0
  %1546 = vmatpush2.msra.mxu0 0.0
  %1547 = vmatprep.subr.mxu0 0.0
  %1548 = vmatpush2.msra.mxu0 0.0
  %1549 = vmatprep.subr.mxu0 0.0
  %1550 = vmatpush2.msra.mxu0 0.0
  %1551 = vmatprep.subr.mxu0 0.0
  %1552 = vmatpush2.msra.mxu0 0.0
  %1553 = vmatprep.subr.mxu0 0.0
  %1554 = vmatpush2.msra.mxu0 0.0
  %1555 = vmatprep.mubr.f32.mxu0 0.0
  %1556 = vmatmul.mubr.f32.gmra.mxu0 %v1489
  %v1557 = vpop.f32.mrf.mxu0
  %v1558 = vadd.f32 0.0, %v1557
  %v1559 = vpop.f32.mrf.mxu0
  %v1560 = vadd.f32 0.0, %v1559
  %1561 = vdwg.mxu0
  %1562 = vmatprep.subr.mxu0 0.0
  %1563 = vmatpush1.msra.mxu0 %v269
  %1564 = vmatprep.subr.mxu0 0.0
  %1565 = vmatpush1.msra.mxu0 %v266
  %1566 = vmatprep.subr.mxu0 0.0
  %1567 = vmatpush1.msra.mxu0 %v263
  %1568 = vmatprep.subr.mxu0 0.0
  %1569 = vmatpush1.msra.mxu0 %v260
  %1570 = vmatprep.subr.mxu0 0.0
  %1571 = vmatpush1.msra.mxu0 %v257
  %1572 = vmatprep.subr.mxu0 0.0
  %1573 = vmatpush1.msra.mxu0 %v254
  %1574 = vmatprep.subr.mxu0 0.0
  %1575 = vmatpush1.msra.mxu0 %v251
  %1576 = vmatprep.subr.mxu0 0.0
  %1577 = vmatpush1.msra.mxu0 %v248
  %1578 = vmatprep.subr.mxu0 0.0
  %1579 = vmatpush1.msra.mxu0 %v245
  %1580 = vmatprep.subr.mxu0 0.0
  %1581 = vmatpush1.msra.mxu0 %v242
  %1582 = vmatprep.subr.mxu0 0.0
  %1583 = vmatpush1.msra.mxu0 %v239
  %1584 = vmatprep.subr.mxu0 0.0
  %1585 = vmatpush1.msra.mxu0 %v236
  %1586 = vmatprep.subr.mxu0 0.0
  %1587 = vmatpush1.msra.mxu0 %v233
  %1588 = vmatprep.subr.mxu0 0.0
  %1589 = vmatpush1.msra.mxu0 %v230
  %1590 = vmatprep.subr.mxu0 0.0
  %1591 = vmatpush1.msra.mxu0 %v227
  %1592 = vmatprep.subr.mxu0 0.0
  %1593 = vmatpush1.msra.mxu0 %v224
  %1594 = vmatprep.subr.mxu0 0.0
  %1595 = vmatpush2.msra.mxu0 0.0
  %1596 = vmatprep.subr.mxu0 0.0
  %1597 = vmatpush2.msra.mxu0 0.0
  %1598 = vmatprep.subr.mxu0 0.0
  %1599 = vmatpush2.msra.mxu0 0.0
  %1600 = vmatprep.subr.mxu0 0.0
  %1601 = vmatpush2.msra.mxu0 0.0
  %1602 = vmatprep.subr.mxu0 0.0
  %1603 = vmatpush2.msra.mxu0 0.0
  %1604 = vmatprep.subr.mxu0 0.0
  %1605 = vmatpush2.msra.mxu0 0.0
  %1606 = vmatprep.subr.mxu0 0.0
  %1607 = vmatpush2.msra.mxu0 0.0
  %1608 = vmatprep.subr.mxu0 0.0
  %1609 = vmatpush2.msra.mxu0 0.0
  %1610 = vmatprep.subr.mxu0 0.0
  %1611 = vmatpush2.msra.mxu0 0.0
  %1612 = vmatprep.subr.mxu0 0.0
  %1613 = vmatpush2.msra.mxu0 0.0
  %1614 = vmatprep.subr.mxu0 0.0
  %1615 = vmatpush2.msra.mxu0 0.0
  %1616 = vmatprep.subr.mxu0 0.0
  %1617 = vmatpush2.msra.mxu0 0.0
  %1618 = vmatprep.subr.mxu0 0.0
  %1619 = vmatpush2.msra.mxu0 0.0
  %1620 = vmatprep.subr.mxu0 0.0
  %1621 = vmatpush2.msra.mxu0 0.0
  %1622 = vmatprep.subr.mxu0 0.0
  %1623 = vmatpush2.msra.mxu0 0.0
  %1624 = vmatprep.subr.mxu0 0.0
  %1625 = vmatpush2.msra.mxu0 0.0
  %1626 = vmatprep.mubr.f32.mxu0 0.0
  %1627 = vmatmul.mubr.f32.gmra.mxu0 %v1489
  %v1628 = vpop.f32.mrf.mxu0
  %v1629 = vadd.f32 0.0, %v1628
  %v1630 = vpop.f32.mrf.mxu0
  %1631 = vdwg.mxu0
  %v1633 = vrot.slane %v1558, 2
  %v1635 = vadd.f32 %v143, %v1633
  %v1636 = vxor.u32 %v1635, 2147483648
  %v1637 = vmul.f32 %v1636, 1.442695
  %v1638 = vpow.pop %v1637
  %v1639 = vadd.f32 %v1638, 1.0
  %v1640 = vrcp.pop %v1639
  %v1641 = vmul.f32 1.0, %v1640
  %v1643 = vrot.slane %v1560, 2
  %v1645 = vadd.f32 %v145, %v1643
  %v1646 = vxor.u32 %v1645, 2147483648
  %v1647 = vmul.f32 %v1646, 1.442695
  %v1648 = vpow.pop %v1647
  %v1649 = vadd.f32 %v1648, 1.0
  %v1650 = vrcp.pop %v1649
  %v1651 = vmul.f32 1.0, %v1650
  %v1652 = vadd.f32 %v1629, %v275
  %v1654 = vrot.slane %v1652, 2
  %v1656 = vmul.f32 %v1641, %v1654
  %v1657 = vadd.f32 %v219, %v1656
  %v1658 = vtanh.pop %v1657
  %v1659 = vsub.f32 1.0, %v1651
  %v1660 = vmul.f32 %v1659, %v1658
  %v1661 = vrot.slane %v1487, 6
  %v1663 = vmul.f32 %v1651, %v1661
  %v1664 = vadd.f32 %v1660, %v1663
  %vm1665 = vcmask 1041408
  %v1666 = vsel %vm1665, %v440, %v615
  %vm1667 = vcmask 1043456
  %v1668 = vsel %vm1667, %v1666, %v792
  %vm1669 = vcmask 1045504
  %v1670 = vsel %vm1669, %v1668, %v969
  %v1671 = vsel %vm1665, %v1135, %v1310
  %v1672 = vsel %vm1667, %v1671, %v1487
  %v1673 = vsel %vm1669, %v1672, %v1664
  %v1674 = vld [vmem:[%s1] sm:$0xff]
  %v1675 = vld [vmem:[%s1 + $0x8] sm:$0xff]
  %vm1676 = vcmp.ne.f32.partialorder %v1674, 0.0
  %vm1677 = vcmp.ne.f32.partialorder %v1675, 0.0
  %v1678 = vsel %vm1676, %v1670, 0.0
  %v1679 = vsel %vm1677, %v1673, 0.0
  %v1680 = vld [vmem:[%s7] sm:$0xff]
  %v1681 = vld [vmem:[%s7 + $0x8] sm:$0xff]
  %v1682 = vld [vmem:[%s7 + $0x10] sm:$0xff]
  %v1683 = vld [vmem:[%s7 + $0x18] sm:$0xff]
  %v1684 = vld [vmem:[%s7 + $0x20] sm:$0xff]
  %v1685 = vld [vmem:[%s7 + $0x28] sm:$0xff]
  %v1686 = vld [vmem:[%s7 + $0x30] sm:$0xff]
  %v1687 = vld [vmem:[%s7 + $0x38] sm:$0xff]
  %v1688 = vld [vmem:[%s7 + $0x40] sm:$0xff]
  %v1689 = vld [vmem:[%s7 + $0x48] sm:$0xff]
  %v1690 = vld [vmem:[%s7 + $0x50] sm:$0xff]
  %v1691 = vld [vmem:[%s7 + $0x58] sm:$0xff]
  %v1692 = vld [vmem:[%s7 + $0x60] sm:$0xff]
  %v1693 = vld [vmem:[%s7 + $0x68] sm:$0xff]
  %v1694 = vld [vmem:[%s7 + $0x70] sm:$0xff]
  %v1695 = vld [vmem:[%s7 + $0x78] sm:$0xff]
  %v1696 = vld [vmem:[%s8] sm:$0x1]
  %v1698 = vlaneseq
  %v1699 = vshrl.u32 %v1698, 7
  %v1700 = vsub.s32 0, %v1699
  %v1701 = vrot.slane %v1696, %v1700
  %1703 = vmatprep.subr.mxu0 0.0
  %1704 = vmatpush1.msra.mxu0 %v1695
  %1705 = vmatprep.subr.mxu0 0.0
  %1706 = vmatpush1.msra.mxu0 %v1694
  %1707 = vmatprep.subr.mxu0 0.0
  %1708 = vmatpush1.msra.mxu0 %v1693
  %1709 = vmatprep.subr.mxu0 0.0
  %1710 = vmatpush1.msra.mxu0 %v1692
  %1711 = vmatprep.subr.mxu0 0.0
  %1712 = vmatpush1.msra.mxu0 %v1691
  %1713 = vmatprep.subr.mxu0 0.0
  %1714 = vmatpush1.msra.mxu0 %v1690
  %1715 = vmatprep.subr.mxu0 0.0
  %1716 = vmatpush1.msra.mxu0 %v1689
  %1717 = vmatprep.subr.mxu0 0.0
  %1718 = vmatpush1.msra.mxu0 %v1688
  %1719 = vmatprep.subr.mxu0 0.0
  %1720 = vmatpush1.msra.mxu0 %v1687
  %1721 = vmatprep.subr.mxu0 0.0
  %1722 = vmatpush1.msra.mxu0 %v1686
  %1723 = vmatprep.subr.mxu0 0.0
  %1724 = vmatpush1.msra.mxu0 %v1685
  %1725 = vmatprep.subr.mxu0 0.0
  %1726 = vmatpush1.msra.mxu0 %v1684
  %1727 = vmatprep.subr.mxu0 0.0
  %1728 = vmatpush1.msra.mxu0 %v1683
  %1729 = vmatprep.subr.mxu0 0.0
  %1730 = vmatpush1.msra.mxu0 %v1682
  %1731 = vmatprep.subr.mxu0 0.0
  %1732 = vmatpush1.msra.mxu0 %v1681
  %1733 = vmatprep.subr.mxu0 0.0
  %1734 = vmatpush1.msra.mxu0 %v1680
  %1735 = vmatprep.subr.mxu0 0.0
  %1736 = vmatpush2.msra.mxu0 0.0
  %1737 = vmatprep.subr.mxu0 0.0
  %1738 = vmatpush2.msra.mxu0 0.0
  %1739 = vmatprep.subr.mxu0 0.0
  %1740 = vmatpush2.msra.mxu0 0.0
  %1741 = vmatprep.subr.mxu0 0.0
  %1742 = vmatpush2.msra.mxu0 0.0
  %1743 = vmatprep.subr.mxu0 0.0
  %1744 = vmatpush2.msra.mxu0 0.0
  %1745 = vmatprep.subr.mxu0 0.0
  %1746 = vmatpush2.msra.mxu0 0.0
  %1747 = vmatprep.subr.mxu0 0.0
  %1748 = vmatpush2.msra.mxu0 0.0
  %1749 = vmatprep.subr.mxu0 0.0
  %1750 = vmatpush2.msra.mxu0 0.0
  %1751 = vmatprep.subr.mxu0 0.0
  %1752 = vmatpush2.msra.mxu0 0.0
  %1753 = vmatprep.subr.mxu0 0.0
  %1754 = vmatpush2.msra.mxu0 0.0
  %1755 = vmatprep.subr.mxu0 0.0
  %1756 = vmatpush2.msra.mxu0 0.0
  %1757 = vmatprep.subr.mxu0 0.0
  %1758 = vmatpush2.msra.mxu0 0.0
  %1759 = vmatprep.subr.mxu0 0.0
  %1760 = vmatpush2.msra.mxu0 0.0
  %1761 = vmatprep.subr.mxu0 0.0
  %1762 = vmatpush2.msra.mxu0 0.0
  %1763 = vmatprep.subr.mxu0 0.0
  %1764 = vmatpush2.msra.mxu0 0.0
  %1765 = vmatprep.subr.mxu0 0.0
  %1766 = vmatpush2.msra.mxu0 0.0
  %1767 = vmatprep.mubr.f32.mxu0 0.0
  %1768 = vmatmul.mubr.f32.gmra.mxu0 %v1678
  %v1769 = vpop.f32.mrf.mxu0
  %v1770 = vadd.f32 %v1701, %v1769
  %v1771 = vpop.f32.mrf.mxu0
  %1772 = vmatprep.mubr.f32.mxu0 0.0
  %1773 = vmatmul.mubr.f32.gmra.mxu0 %v1679
  %v1774 = vpop.f32.mrf.mxu0
  %v1775 = vadd.f32 %v1701, %v1774
  %v1776 = vpop.f32.mrf.mxu0
  %1777 = vdwg.mxu0
  %1778 = vst [vmem:[%s9] sm:$0xff] %v1770
  %1779 = vst [vmem:[%s9 + $0x8] sm:$0xff] %v1775
  // Predicated region
  $region38: #{_joint_post_process_impl.1} parent=0 // pred_check
    _
  $region39: #{_joint_post_process_impl.1} parent=0 // pred_check_branch
    %1781 = sbr.rel (0) target = $region41
  $region40: #{_joint_post_process_impl.1} parent=0 // pred_region
    _
  $region41: #{_joint_post_process_impl.1} parent=0 // pred_fallthru
    _
  // Predicated region
  $region42: #{_joint_post_process_impl.1} parent=0 // pred_check
    _
  $region43: #{_joint_post_process_impl.1} parent=0 // pred_check_branch
    %1783 = sbr.rel (0) target = $region45
  $region44: #{_joint_post_process_impl.1} parent=0 // pred_region
    _
  $region45: #{_joint_post_process_impl.1} parent=0 // pred_fallthru
    _

</llo_original>
